<compile_context>
chip_gen: v6e
topology: v6e:2x2x1
jax: 0.10.0
libtpu: 0.0.40
codegen_flags: <defaults>
</compile_context>

<pallas_src>
import functools
import numpy as np
import jax
import jax.numpy as jnp
from jax import lax
from jax.experimental import pallas as pl
from jax.experimental.pallas import tpu as pltpu

_HIGHEST = lax.Precision.HIGHEST

_VMEM_LIMIT = 32 * 1024 * 1024      # explicit scoped-VMEM limit (safe on v5e/v6e/v7x)
_BLOCK_BUDGET = 16 * 1024 * 1024    # byte budget for double-buffered per-block data


# -----------------------------------------------------------------------------
# Kernel 1: Q/K matmuls, significance mask (bf16) and raw attention score.
# -----------------------------------------------------------------------------
def _mask_score_kernel(x_ref, wq_ref, wk_ref, bq_ref, bk_ref, cw_ref, avgq_ref,
                       mask_ref, s_ref, *, inv_sqrt_c):
    x = x_ref[...]                                                    # (R, C) bf16
    q = jnp.dot(x, wq_ref[...], preferred_element_type=jnp.float32) + bq_ref[...]
    k = jnp.dot(x, wk_ref[...], preferred_element_type=jnp.float32) + bk_ref[...]
    s_ref[...] = jnp.sum(q * k, axis=-1, keepdims=True) * inv_sqrt_c  # (R, 1)
    qw = q * cw_ref[...]
    mask_ref[...] = jnp.where(qw >= avgq_ref[...], 1.0, 0.0).astype(jnp.bfloat16)


# -----------------------------------------------------------------------------
# Kernel 2: edge-gated softmax over W (lane axis), vectorized over D*H groups.
#   ew = sigmoid(edge_features); sc = s*ew^2 == (Q*ew).(K*ew)/sqrt(C)
#   scale = softmax_W(sc) * ew
# -----------------------------------------------------------------------------
def _edge_softmax_kernel(s_ref, e_ref, scale_ref):
    ew = pl.reciprocal(1.0 + jnp.exp(-e_ref[...]), approx=True)       # EUP sigmoid
    sc = s_ref[...] * ew * ew
    m = jnp.max(sc, axis=-1, keepdims=True)
    p = jnp.exp(sc - m)
    inv = pl.reciprocal(jnp.sum(p, axis=-1, keepdims=True), approx=True)
    scale_ref[...] = p * inv * ew


# -----------------------------------------------------------------------------
# Kernel 3: recompute V@Wo from x (bf16, MXU) and apply the per-voxel scale.
#   out = scale * (x @ (Wv@Wo) + bv@Wo) + bo
# -----------------------------------------------------------------------------
def _apply_out_kernel(x_ref, sc_ref, wvo_ref, bvo_ref, bo_ref, o_ref):
    vo = jnp.dot(x_ref[...], wvo_ref[...],
                 preferred_element_type=jnp.float32) + bvo_ref[...]
    o_ref[...] = vo * sc_ref[...] + bo_ref[...]


# -----------------------------------------------------------------------------
# BlockSpec helpers / tiling
# -----------------------------------------------------------------------------
def _full_spec(arr):
    zeros = (0,) * arr.ndim
    return pl.BlockSpec(arr.shape, lambda b, t, _z=zeros: _z)


def _row_spec(rows, cols):
    # (B, R, cols) arrays tiled over (batch, row-tile); batch dim squeezed.
    return pl.BlockSpec((None, rows, cols), lambda b, t: (b, t, 0))


def _bcast_spec(cols):
    # (B, 1, cols) per-batch vectors, same block for every row tile.
    return pl.BlockSpec((None, 1, cols), lambda b, t: (b, 0, 0))


def _cparams():
    return pltpu.CompilerParams(
        dimension_semantics=("parallel", "parallel"),
        vmem_limit_bytes=_VMEM_LIMIT)


def _pick_rows(total, bytes_per_row, *, budget=_BLOCK_BUDGET, max_rows=2048):
    """Largest sublane-aligned divisor of `total` whose block bytes fit the budget."""
    cap = int(min(total, max_rows, max(8, budget // max(1, bytes_per_row))))
    for align in (16, 8):                       # prefer bf16-tile (16) alignment
        c = cap - cap % align
        for d in range(c, align - 1, -align):
            if total % d == 0:
                return d
    for align in (16, 8):                       # smallest aligned divisor (rare fallback)
        for d in range(align, min(total, 65536) + 1, align):
            if total % d == 0:
                return d
    return total                                # last resort: single block


# -----------------------------------------------------------------------------
# pallas_call wrappers (grid = (batch, row-tile), both axes parallel)
# -----------------------------------------------------------------------------
def mask_and_scores(x_bf, wq, wk, bq, bk, cw, avg_q, *, row_tile):
    B, N, C = x_bf.shape
    return pl.pallas_call(
        functools.partial(_mask_score_kernel, inv_sqrt_c=float(1.0 / np.sqrt(C))),
        grid=(B, N // row_tile),
        in_specs=[_row_spec(row_tile, C), _full_spec(wq), _full_spec(wk),
                  _full_spec(bq), _full_spec(bk), _bcast_spec(C), _bcast_spec(C)],
        out_specs=(_row_spec(row_tile, C), _row_spec(row_tile, 1)),
        out_shape=(jax.ShapeDtypeStruct((B, N, C), jnp.bfloat16),
                   jax.ShapeDtypeStruct((B, N, 1), jnp.float32)),
        compiler_params=_cparams(),
    )(x_bf, wq, wk, bq, bk, cw, avg_q)


def edge_softmax_scale(s_g, e_g, *, grp_tile):
    B, G, W = s_g.shape
    return pl.pallas_call(
        _edge_softmax_kernel,
        grid=(B, G // grp_tile),
        in_specs=[_row_spec(grp_tile, W), _row_spec(grp_tile, W)],
        out_specs=_row_spec(grp_tile, W),
        out_shape=jax.ShapeDtypeStruct((B, G, W), jnp.float32),
        compiler_params=_cparams(),
    )(s_g, e_g)


def apply_output(x_bf, scale_n, w_vo, b_vo, bo, *, row_tile):
    B, N, C = x_bf.shape
    return pl.pallas_call(
        _apply_out_kernel,
        grid=(B, N // row_tile),
        in_specs=[_row_spec(row_tile, C), _row_spec(row_tile, 1),
                  _full_spec(w_vo), _full_spec(b_vo), _full_spec(bo)],
        out_specs=_row_spec(row_tile, C),
        out_shape=jax.ShapeDtypeStruct((B, N, C), jnp.float32),
        compiler_params=_cparams(),
    )(x_bf, scale_n, w_vo, b_vo, bo)


# -----------------------------------------------------------------------------
# Forward pass
# -----------------------------------------------------------------------------
def learnable_edge_attention_forward(x_ncdhw, p, *, row_max=2048, grp_max=1024):
    B, C, D, H, W = x_ncdhw.shape
    N, G = D * H * W, D * H

    # entry layout change: NCDHW -> channels-last flattened (B, N, C), cast to bf16 first
    # so the transpose writes half the bytes.
    x_bf = jnp.transpose(x_ncdhw.astype(jnp.bfloat16), (0, 2, 3, 4, 1)).reshape(B, N, C)

    # channel-attention (squeeze-excite) on pooled Q, via linearity of the 1x1 conv:
    # mean_N(Q) = mean_N(x) @ Wq + bq.  O(C^2) flops -> plain JAX glue, f32.
    pooled_x = jnp.mean(x_ncdhw, axis=(2, 3, 4))                    # (B, C) f32
    pooled_q = pooled_x @ p["wq"] + p["bq"]                         # (B, C)
    h = jax.nn.relu(pooled_q @ p["ca_w1"] + p["ca_b1"])
    cw = jax.nn.sigmoid(h @ p["ca_w2"] + p["ca_b2"])                # (B, C)
    avg_q = (pooled_q * cw)[:, None, :]   # == mean_N(Q*cw) since cw is constant over N
    cw = cw[:, None, :]                                             # (B, 1, C)

    # byte-budgeted tiles (block bytes incl. double-buffering)
    row_tile_1 = _pick_rows(N, 2 * (2 * C + 2 * C + 4), max_rows=row_max)
    row_tile_3 = _pick_rows(N, 2 * (2 * C + 4 * C + 4), max_rows=row_max)
    grp_tile = _pick_rows(G, 2 * (3 * W * 4), max_rows=grp_max)

    # kernel 1: mask (bf16) + raw scores
    mask, s = mask_and_scores(x_bf, p["wq_bf"], p["wk_bf"], p["bq"], p["bk"],
                              cw, avg_q, row_tile=row_tile_1)

    # 3x3x3 edge convs on the 0/1 mask via XLA, channels-last, bf16 with f32 accumulation.
    dn = ("NDHWC", "DHWIO", "NDHWC")
    pad = [(1, 1)] * 3
    e1 = lax.conv_general_dilated(mask.reshape(B, D, H, W, C), p["edge_w1_bf"],
                                  (1, 1, 1), pad, dimension_numbers=dn,
                                  preferred_element_type=jnp.float32)
    e1 = jax.nn.relu(e1 + p["edge_b1"].reshape(1, 1, 1, 1, -1)).astype(jnp.bfloat16)
    e2 = lax.conv_general_dilated(e1, p["edge_w2_bf"], (1, 1, 1), pad,
                                  dimension_numbers=dn,
                                  preferred_element_type=jnp.float32)
    e2 = e2 + p["edge_b2"].reshape(1, 1, 1, 1, -1)       # sigmoid applied in-kernel

    # kernel 2: softmax over W on a lane-dense (D*H, W) layout, edge gating fused in.
    scale_g = edge_softmax_scale(s.reshape(B, G, W), e2.reshape(B, G, W),
                                 grp_tile=grp_tile)

    # kernel 3: recompute V@Wo from x and apply the per-voxel scale + output bias.
    out_flat = apply_output(x_bf, scale_g.reshape(B, N, 1),
                            p["w_vo_bf"], p["b_vo"], p["bo"], row_tile=row_tile_3)

    out = jnp.transpose(out_flat.reshape(B, D, H, W, C), (0, 4, 1, 2, 3))
    return out, mask, s


# -----------------------------------------------------------------------------
# Deterministic synthetic parameters (shapes follow the PyTorch __init__)
# -----------------------------------------------------------------------------
def init_params(key, C):
    Cm = max(C // 8, 1)
    Ch = C // 2
    ks = jax.random.split(key, 16)

    def rnd(k, shape, scale=0.1):
        return (scale * jax.random.normal(k, shape)).astype(jnp.float32)

    p = {
        # 1x1x1 convs in matmul form: w[cin, cout] == torch_weight[cout, cin, 0, 0, 0]
        "wq": rnd(ks[0], (C, C)), "bq": rnd(ks[1], (1, C)),
        "wk": rnd(ks[2], (C, C)), "bk": rnd(ks[3], (1, C)),
        "wv": rnd(ks[4], (C, C)), "bv": rnd(ks[5], (1, C)),
        "wo": rnd(ks[6], (C, C)), "bo": rnd(ks[7], (1, C)),
        "ca_w1": rnd(ks[8], (C, Cm)), "ca_b1": rnd(ks[9], (1, Cm)),
        "ca_w2": rnd(ks[10], (Cm, C)), "ca_b2": rnd(ks[11], (1, C)),
        # 3x3x3 edge convs, torch layout (Cout, Cin, kd, kh, kw)
        "edge_w1_torch": rnd(ks[12], (Ch, C, 3, 3, 3)),
        "edge_b1": rnd(ks[13], (1, Ch)),
        "edge_w2_torch": rnd(ks[14], (1, Ch, 3, 3, 3)),
        "edge_b2": rnd(ks[15], (1, 1)),
    }
    # bf16 / layout-converted parameters for the Pallas + XLA pipeline
    p["wq_bf"] = p["wq"].astype(jnp.bfloat16)
    p["wk_bf"] = p["wk"].astype(jnp.bfloat16)
    p["w_vo_bf"] = (p["wv"] @ p["wo"]).astype(jnp.bfloat16)   # output conv folded into V
    p["b_vo"] = p["bv"] @ p["wo"]
    p["edge_w1_bf"] = jnp.transpose(p["edge_w1_torch"], (2, 3, 4, 1, 0)).astype(jnp.bfloat16)
    p["edge_w2_bf"] = jnp.transpose(p["edge_w2_torch"], (2, 3, 4, 1, 0)).astype(jnp.bfloat16)
    return p


# -----------------------------------------------------------------------------
# Pure-JAX reference (mirrors the PyTorch forward, f32 HIGHEST), for verification
# -----------------------------------------------------------------------------
def reference_forward(x, p, mask_override=None):
    B, C, D, H, W = x.shape

    def conv1x1(inp, w_mat, b):
        return (jnp.einsum("bcdhw,co->bodhw", inp, w_mat, precision=_HIGHEST)
                + b.reshape(1, -1, 1, 1, 1))

    Q = conv1x1(x, p["wq"], p["bq"])
    K = conv1x1(x, p["wk"], p["bk"])
    V = conv1x1(x, p["wv"], p["bv"])
    pooled = jnp.mean(Q, axis=(2, 3, 4), keepdims=True)
    h = jax.nn.relu(conv1x1(pooled, p["ca_w1"], p["ca_b1"]))
    cw = jax.nn.sigmoid(conv1x1(h, p["ca_w2"], p["ca_b2"]))
    Qw = Q * cw
    avg_Q = jnp.mean(Qw, axis=(2, 3, 4), keepdims=True)
    mask = (Qw >= avg_Q).astype(jnp.float32)
    if mask_override is not None:
        mask = mask_override
    dn = ("NCDHW", "OIDHW", "NCDHW")
    pad = [(1, 1), (1, 1), (1, 1)]
    e = lax.conv_general_dilated(mask, p["edge_w1_torch"], (1, 1, 1), pad,
                                 dimension_numbers=dn, precision=_HIGHEST)
    e = jax.nn.relu(e + p["edge_b1"].reshape(1, -1, 1, 1, 1))
    e = lax.conv_general_dilated(e, p["edge_w2_torch"], (1, 1, 1), pad,
                                 dimension_numbers=dn, precision=_HIGHEST)
    ew = jax.nn.sigmoid(e + p["edge_b2"].reshape(1, -1, 1, 1, 1))
    Qe, Ke, Ve = Q * ew, K * ew, V * ew
    scores = jnp.einsum("bcdhw,bcdhw->bdhw", Qe, Ke, precision=_HIGHEST) / (C ** 0.5)
    attw = jax.nn.softmax(scores, axis=-1)
    att = attw[:, None] * Ve
    out = conv1x1(att, p["wo"], p["bo"])
    return out, mask, (Q, K, V)


if __name__ == "__main__":
    B, C, D, H, W = 2, 16, 8, 8, 8
    key = jax.random.PRNGKey(0)
    kx, kp = jax.random.split(key)
    x = jax.random.normal(kx, (B, C, D, H, W), dtype=jnp.float32)
    params = init_params(kp, C)

    # small tile caps so the toy shape exercises multi-tile grids / index maps
    fwd = jax.jit(functools.partial(learnable_edge_attention_forward,
                                    row_max=128, grp_max=16))
    out, mask_k, s_k = fwd(x, params)
    out = jax.block_until_ready(out)

    # ---- correctness checks against the pure-JAX (HIGHEST precision) reference ----
    ref_out, ref_mask, (Qr, Kr, Vr) = reference_forward(x, params)

    def to_ncdhw(a, ch):
        return jnp.transpose(a.reshape(B, D, H, W, ch), (0, 4, 1, 2, 3))

    # raw attention scores (pre edge-gating), bf16 MXU vs f32 HIGHEST reference
    s_ref = jnp.einsum("bcdhw,bcdhw->bdhw", Qr, Kr, precision=_HIGHEST) / (C ** 0.5)
    np.testing.assert_allclose(np.asarray(s_k.reshape(B, D, H, W)), np.asarray(s_ref),
                               atol=2e-2, rtol=2e-2)

    # significance mask (bf16 matmul + linearity rearrangement can flip near-ties)
    mask_n = to_ncdhw(mask_k.astype(jnp.float32), C)
    agree = float(jnp.mean((mask_n == ref_mask).astype(jnp.float32)))
    assert agree >= 0.96, f"significance-mask agreement too low: {agree}"

    # end-to-end: reference re-run with the kernel's mask so threshold tie flips
    # cannot change which voxels feed the edge conv
    ref_out_sub, _, _ = reference_forward(x, params, mask_override=mask_n)
    np.testing.assert_allclose(np.asarray(out), np.asarray(ref_out_sub),
                               atol=2e-2, rtol=2e-2)

    print("KERNEL_OK")
</pallas_src>

<mosaic_0001>
module attributes {stable_mosaic.version = 11 : i64} {
  func.func @_mask_score_kernel(%arg0: i32, %arg1: i32, %arg2: memref<1x128x16xbf16, #tpu.memory_space<vmem>>, %arg3: memref<16x16xbf16, #tpu.memory_space<vmem>>, %arg4: memref<16x16xbf16, #tpu.memory_space<vmem>>, %arg5: memref<1x16xf32, #tpu.memory_space<vmem>>, %arg6: memref<1x16xf32, #tpu.memory_space<vmem>>, %arg7: memref<1x1x16xf32, #tpu.memory_space<vmem>>, %arg8: memref<1x1x16xf32, #tpu.memory_space<vmem>>, %arg9: memref<1x128x16xbf16, #tpu.memory_space<vmem>>, %arg10: memref<1x128x1xf32, #tpu.memory_space<vmem>>) attributes {dimension_semantics = [#tpu.dimension_semantics<parallel>, #tpu.dimension_semantics<parallel>], iteration_bounds = array<i64: 2, 4>, scalar_prefetch = 0 : i64, scratch_operands = 0 : i64, tpu.core_type = #tpu.core_type<tc>, window_params = [{transform_indices = @transform_0, window_bounds = array<i64: 1, 128, 16>}, {pipeline_mode = #tpu.pipeline_mode<synchronous>, transform_indices = @transform_1, window_bounds = array<i64: 16, 16>}, {pipeline_mode = #tpu.pipeline_mode<synchronous>, transform_indices = @transform_2, window_bounds = array<i64: 16, 16>}, {pipeline_mode = #tpu.pipeline_mode<synchronous>, transform_indices = @transform_3, window_bounds = array<i64: 1, 16>}, {pipeline_mode = #tpu.pipeline_mode<synchronous>, transform_indices = @transform_4, window_bounds = array<i64: 1, 16>}, {transform_indices = @transform_5, window_bounds = array<i64: 1, 1, 16>}, {transform_indices = @transform_6, window_bounds = array<i64: 1, 1, 16>}, {transform_indices = @transform_7, window_bounds = array<i64: 1, 128, 16>}, {transform_indices = @transform_8, window_bounds = array<i64: 1, 128, 1>}]} {
    %c0 = arith.constant 0 : index
    %c0_0 = arith.constant 0 : index
    %c0_1 = arith.constant 0 : index
    %0 = vector.load %arg2[%c0, %c0_0, %c0_1] : memref<1x128x16xbf16, #tpu.memory_space<vmem>>, vector<1x128x16xbf16>
    %1 = vector.shape_cast %0 : vector<1x128x16xbf16> to vector<128x16xbf16>
    %c0_2 = arith.constant 0 : index
    %c0_3 = arith.constant 0 : index
    %2 = vector.load %arg3[%c0_2, %c0_3] : memref<16x16xbf16, #tpu.memory_space<vmem>>, vector<16x16xbf16>
    %cst = arith.constant dense<0.000000e+00> : vector<128x16xf32>
    %3 = tpu.matmul %1, %2, %cst {dimension_numbers = #tpu.dot_dimension_numbers<[1], [0], [0], [1], [0, 0, 1, 1], [], []>} : vector<128x16xbf16>, vector<16x16xbf16>, vector<128x16xf32> -> vector<128x16xf32>
    %c0_4 = arith.constant 0 : index
    %c0_5 = arith.constant 0 : index
    %4 = vector.load %arg5[%c0_4, %c0_5] : memref<1x16xf32, #tpu.memory_space<vmem>>, vector<1x16xf32>
    %5 = vector.broadcast %4 : vector<1x16xf32> to vector<128x16xf32>
    %6 = arith.addf %3, %5 : vector<128x16xf32>
    %c0_6 = arith.constant 0 : index
    %c0_7 = arith.constant 0 : index
    %7 = vector.load %arg4[%c0_6, %c0_7] : memref<16x16xbf16, #tpu.memory_space<vmem>>, vector<16x16xbf16>
    %cst_8 = arith.constant dense<0.000000e+00> : vector<128x16xf32>
    %8 = tpu.matmul %1, %7, %cst_8 {dimension_numbers = #tpu.dot_dimension_numbers<[1], [0], [0], [1], [0, 0, 1, 1], [], []>} : vector<128x16xbf16>, vector<16x16xbf16>, vector<128x16xf32> -> vector<128x16xf32>
    %c0_9 = arith.constant 0 : index
    %c0_10 = arith.constant 0 : index
    %9 = vector.load %arg6[%c0_9, %c0_10] : memref<1x16xf32, #tpu.memory_space<vmem>>, vector<1x16xf32>
    %10 = vector.broadcast %9 : vector<1x16xf32> to vector<128x16xf32>
    %11 = arith.addf %8, %10 : vector<128x16xf32>
    %12 = arith.mulf %6, %11 : vector<128x16xf32>
    %cst_11 = arith.constant dense<0.000000e+00> : vector<128xf32>
    %13 = vector.multi_reduction <add>, %12, %cst_11 [1] : vector<128x16xf32> to vector<128xf32>
    %14 = vector.shape_cast %13 : vector<128xf32> to vector<128x1xf32>
    %cst_12 = arith.constant 2.500000e-01 : f32
    %15 = vector.broadcast %cst_12 : f32 to vector<128x1xf32>
    %16 = arith.mulf %14, %15 : vector<128x1xf32>
    %c0_13 = arith.constant 0 : index
    %c0_14 = arith.constant 0 : index
    %c0_15 = arith.constant 0 : index
    %17 = vector.load %arg10[%c0_13, %c0_14, %c0_15] : memref<1x128x1xf32, #tpu.memory_space<vmem>>, vector<1x128x1xf32>
    %18 = vector.shape_cast %17 : vector<1x128x1xf32> to vector<128x1xf32>
    %19 = vector.shape_cast %16 : vector<128x1xf32> to vector<1x128x1xf32>
    tpu.vector_store %arg10[%c0_13, %c0_14, %c0_15], %19 {strides = array<i32>} : memref<1x128x1xf32, #tpu.memory_space<vmem>>, vector<1x128x1xf32>,
    %c0_16 = arith.constant 0 : index
    %c0_17 = arith.constant 0 : index
    %c0_18 = arith.constant 0 : index
    %20 = vector.load %arg7[%c0_16, %c0_17, %c0_18] : memref<1x1x16xf32, #tpu.memory_space<vmem>>, vector<1x1x16xf32>
    %21 = vector.shape_cast %20 : vector<1x1x16xf32> to vector<1x16xf32>
    %22 = vector.broadcast %21 : vector<1x16xf32> to vector<128x16xf32>
    %23 = arith.mulf %6, %22 : vector<128x16xf32>
    %c0_19 = arith.constant 0 : index
    %c0_20 = arith.constant 0 : index
    %c0_21 = arith.constant 0 : index
    %24 = vector.load %arg8[%c0_19, %c0_20, %c0_21] : memref<1x1x16xf32, #tpu.memory_space<vmem>>, vector<1x1x16xf32>
    %25 = vector.shape_cast %24 : vector<1x1x16xf32> to vector<1x16xf32>
    %26 = vector.broadcast %25 : vector<1x16xf32> to vector<128x16xf32>
    %27 = arith.cmpf oge, %23, %26 : vector<128x16xf32>
    %cst_22 = arith.constant 1.000000e+00 : f32
    %cst_23 = arith.constant 0.000000e+00 : f32
    %28 = vector.broadcast %cst_22 : f32 to vector<128x16xf32>
    %29 = vector.broadcast %cst_23 : f32 to vector<128x16xf32>
    %30 = arith.select %27, %28, %29 : vector<128x16xi1>, vector<128x16xf32>
    %31 = arith.truncf %30 : vector<128x16xf32> to vector<128x16xbf16>
    %c0_24 = arith.constant 0 : index
    %c0_25 = arith.constant 0 : index
    %c0_26 = arith.constant 0 : index
    %32 = vector.load %arg9[%c0_24, %c0_25, %c0_26] : memref<1x128x16xbf16, #tpu.memory_space<vmem>>, vector<1x128x16xbf16>
    %33 = vector.shape_cast %32 : vector<1x128x16xbf16> to vector<128x16xbf16>
    %34 = vector.shape_cast %31 : vector<128x16xbf16> to vector<1x128x16xbf16>
    tpu.vector_store %arg9[%c0_24, %c0_25, %c0_26], %34 {strides = array<i32>} : memref<1x128x16xbf16, #tpu.memory_space<vmem>>, vector<1x128x16xbf16>,
    return
  }
  func.func @transform_0(%arg0: i32, %arg1: i32) -> (i32, i32, i32) {
    %c0_i32 = arith.constant 0 : i32
    %c0_i32_0 = arith.constant 0 : i32
    return %arg0, %arg1, %c0_i32 : i32, i32, i32
  }
  func.func @transform_1(%arg0: i32, %arg1: i32) -> (i32, i32) {
    %c0_i32 = arith.constant 0 : i32
    %c0_i32_0 = arith.constant 0 : i32
    %c0_i32_1 = arith.constant 0 : i32
    return %c0_i32, %c0_i32_0 : i32, i32
  }
  func.func @transform_2(%arg0: i32, %arg1: i32) -> (i32, i32) {
    %c0_i32 = arith.constant 0 : i32
    %c0_i32_0 = arith.constant 0 : i32
    %c0_i32_1 = arith.constant 0 : i32
    return %c0_i32, %c0_i32_0 : i32, i32
  }
  func.func @transform_3(%arg0: i32, %arg1: i32) -> (i32, i32) {
    %c0_i32 = arith.constant 0 : i32
    %c0_i32_0 = arith.constant 0 : i32
    %c0_i32_1 = arith.constant 0 : i32
    return %c0_i32, %c0_i32_0 : i32, i32
  }
  func.func @transform_4(%arg0: i32, %arg1: i32) -> (i32, i32) {
    %c0_i32 = arith.constant 0 : i32
    %c0_i32_0 = arith.constant 0 : i32
    %c0_i32_1 = arith.constant 0 : i32
    return %c0_i32, %c0_i32_0 : i32, i32
  }
  func.func @transform_5(%arg0: i32, %arg1: i32) -> (i32, i32, i32) {
    %c0_i32 = arith.constant 0 : i32
    %c0_i32_0 = arith.constant 0 : i32
    %c0_i32_1 = arith.constant 0 : i32
    return %arg0, %c0_i32, %c0_i32_0 : i32, i32, i32
  }
  func.func @transform_6(%arg0: i32, %arg1: i32) -> (i32, i32, i32) {
    %c0_i32 = arith.constant 0 : i32
    %c0_i32_0 = arith.constant 0 : i32
    %c0_i32_1 = arith.constant 0 : i32
    return %arg0, %c0_i32, %c0_i32_0 : i32, i32, i32
  }
  func.func @transform_7(%arg0: i32, %arg1: i32) -> (i32, i32, i32) {
    %c0_i32 = arith.constant 0 : i32
    %c0_i32_0 = arith.constant 0 : i32
    return %arg0, %arg1, %c0_i32 : i32, i32, i32
  }
  func.func @transform_8(%arg0: i32, %arg1: i32) -> (i32, i32, i32) {
    %c0_i32 = arith.constant 0 : i32
    %c0_i32_0 = arith.constant 0 : i32
    return %arg0, %arg1, %c0_i32 : i32, i32, i32
  }
}

module attributes {stable_mosaic.version = 11 : i64} {
  func.func @_edge_softmax_kernel(%arg0: i32, %arg1: i32, %arg2: memref<1x16x8xf32, #tpu.memory_space<vmem>>, %arg3: memref<1x16x8xf32, #tpu.memory_space<vmem>>, %arg4: memref<1x16x8xf32, #tpu.memory_space<vmem>>) attributes {dimension_semantics = [#tpu.dimension_semantics<parallel>, #tpu.dimension_semantics<parallel>], iteration_bounds = array<i64: 2, 4>, scalar_prefetch = 0 : i64, scratch_operands = 0 : i64, tpu.core_type = #tpu.core_type<tc>, window_params = [{transform_indices = @transform_0, window_bounds = array<i64: 1, 16, 8>}, {transform_indices = @transform_1, window_bounds = array<i64: 1, 16, 8>}, {transform_indices = @transform_2, window_bounds = array<i64: 1, 16, 8>}]} {
    %c0 = arith.constant 0 : index
    %c0_0 = arith.constant 0 : index
    %c0_1 = arith.constant 0 : index
    %0 = vector.load %arg3[%c0, %c0_0, %c0_1] : memref<1x16x8xf32, #tpu.memory_space<vmem>>, vector<1x16x8xf32>
    %1 = vector.shape_cast %0 : vector<1x16x8xf32> to vector<16x8xf32>
    %cst = arith.constant 0.000000e+00 : f32
    %2 = vector.broadcast %cst : f32 to vector<16x8xf32>
    %3 = arith.subf %2, %1 : vector<16x8xf32>
    %4 = math.exp %3 : vector<16x8xf32>
    %cst_2 = arith.constant 1.000000e+00 : f32
    %5 = vector.broadcast %cst_2 : f32 to vector<16x8xf32>
    %6 = arith.addf %5, %4 : vector<16x8xf32>
    %7 = tpu.reciprocal %6 {approx = true} : vector<16x8xf32> -> vector<16x8xf32>
    %c0_3 = arith.constant 0 : index
    %c0_4 = arith.constant 0 : index
    %c0_5 = arith.constant 0 : index
    %8 = vector.load %arg2[%c0_3, %c0_4, %c0_5] : memref<1x16x8xf32, #tpu.memory_space<vmem>>, vector<1x16x8xf32>
    %9 = vector.shape_cast %8 : vector<1x16x8xf32> to vector<16x8xf32>
    %10 = arith.mulf %9, %7 : vector<16x8xf32>
    %11 = arith.mulf %10, %7 : vector<16x8xf32>
    %cst_6 = arith.constant dense<0xFF800000> : vector<16xf32>
    %12 = vector.multi_reduction <maximumf>, %11, %cst_6 [1] : vector<16x8xf32> to vector<16xf32>
    %13 = vector.shape_cast %12 : vector<16xf32> to vector<16x1xf32>
    %14 = vector.broadcast %13 : vector<16x1xf32> to vector<16x8xf32>
    %15 = arith.subf %11, %14 : vector<16x8xf32>
    %16 = math.exp %15 : vector<16x8xf32>
    %cst_7 = arith.constant dense<0.000000e+00> : vector<16xf32>
    %17 = vector.multi_reduction <add>, %16, %cst_7 [1] : vector<16x8xf32> to vector<16xf32>
    %18 = vector.shape_cast %17 : vector<16xf32> to vector<16x1xf32>
    %19 = tpu.reciprocal %18 {approx = true} : vector<16x1xf32> -> vector<16x1xf32>
    %20 = vector.broadcast %19 : vector<16x1xf32> to vector<16x8xf32>
    %21 = arith.mulf %16, %20 : vector<16x8xf32>
    %22 = arith.mulf %21, %7 : vector<16x8xf32>
    %c0_8 = arith.constant 0 : index
    %c0_9 = arith.constant 0 : index
    %c0_10 = arith.constant 0 : index
    %23 = vector.load %arg4[%c0_8, %c0_9, %c0_10] : memref<1x16x8xf32, #tpu.memory_space<vmem>>, vector<1x16x8xf32>
    %24 = vector.shape_cast %23 : vector<1x16x8xf32> to vector<16x8xf32>
    %25 = vector.shape_cast %22 : vector<16x8xf32> to vector<1x16x8xf32>
    tpu.vector_store %arg4[%c0_8, %c0_9, %c0_10], %25 {strides = array<i32>} : memref<1x16x8xf32, #tpu.memory_space<vmem>>, vector<1x16x8xf32>,
    return
  }
  func.func @transform_0(%arg0: i32, %arg1: i32) -> (i32, i32, i32) {
    %c0_i32 = arith.constant 0 : i32
    %c0_i32_0 = arith.constant 0 : i32
    return %arg0, %arg1, %c0_i32 : i32, i32, i32
  }
  func.func @transform_1(%arg0: i32, %arg1: i32) -> (i32, i32, i32) {
    %c0_i32 = arith.constant 0 : i32
    %c0_i32_0 = arith.constant 0 : i32
    return %arg0, %arg1, %c0_i32 : i32, i32, i32
  }
  func.func @transform_2(%arg0: i32, %arg1: i32) -> (i32, i32, i32) {
    %c0_i32 = arith.constant 0 : i32
    %c0_i32_0 = arith.constant 0 : i32
    return %arg0, %arg1, %c0_i32 : i32, i32, i32
  }
}

module attributes {stable_mosaic.version = 11 : i64} {
  func.func @_apply_out_kernel(%arg0: i32, %arg1: i32, %arg2: memref<1x128x16xbf16, #tpu.memory_space<vmem>>, %arg3: memref<1x128x1xf32, #tpu.memory_space<vmem>>, %arg4: memref<16x16xbf16, #tpu.memory_space<vmem>>, %arg5: memref<1x16xf32, #tpu.memory_space<vmem>>, %arg6: memref<1x16xf32, #tpu.memory_space<vmem>>, %arg7: memref<1x128x16xf32, #tpu.memory_space<vmem>>) attributes {dimension_semantics = [#tpu.dimension_semantics<parallel>, #tpu.dimension_semantics<parallel>], iteration_bounds = array<i64: 2, 4>, scalar_prefetch = 0 : i64, scratch_operands = 0 : i64, tpu.core_type = #tpu.core_type<tc>, window_params = [{transform_indices = @transform_0, window_bounds = array<i64: 1, 128, 16>}, {transform_indices = @transform_1, window_bounds = array<i64: 1, 128, 1>}, {pipeline_mode = #tpu.pipeline_mode<synchronous>, transform_indices = @transform_2, window_bounds = array<i64: 16, 16>}, {pipeline_mode = #tpu.pipeline_mode<synchronous>, transform_indices = @transform_3, window_bounds = array<i64: 1, 16>}, {pipeline_mode = #tpu.pipeline_mode<synchronous>, transform_indices = @transform_4, window_bounds = array<i64: 1, 16>}, {transform_indices = @transform_5, window_bounds = array<i64: 1, 128, 16>}]} {
    %c0 = arith.constant 0 : index
    %c0_0 = arith.constant 0 : index
    %c0_1 = arith.constant 0 : index
    %0 = vector.load %arg2[%c0, %c0_0, %c0_1] : memref<1x128x16xbf16, #tpu.memory_space<vmem>>, vector<1x128x16xbf16>
    %1 = vector.shape_cast %0 : vector<1x128x16xbf16> to vector<128x16xbf16>
    %c0_2 = arith.constant 0 : index
    %c0_3 = arith.constant 0 : index
    %2 = vector.load %arg4[%c0_2, %c0_3] : memref<16x16xbf16, #tpu.memory_space<vmem>>, vector<16x16xbf16>
    %cst = arith.constant dense<0.000000e+00> : vector<128x16xf32>
    %3 = tpu.matmul %1, %2, %cst {dimension_numbers = #tpu.dot_dimension_numbers<[1], [0], [0], [1], [0, 0, 1, 1], [], []>} : vector<128x16xbf16>, vector<16x16xbf16>, vector<128x16xf32> -> vector<128x16xf32>
    %c0_4 = arith.constant 0 : index
    %c0_5 = arith.constant 0 : index
    %4 = vector.load %arg5[%c0_4, %c0_5] : memref<1x16xf32, #tpu.memory_space<vmem>>, vector<1x16xf32>
    %5 = vector.broadcast %4 : vector<1x16xf32> to vector<128x16xf32>
    %6 = arith.addf %3, %5 : vector<128x16xf32>
    %c0_6 = arith.constant 0 : index
    %c0_7 = arith.constant 0 : index
    %c0_8 = arith.constant 0 : index
    %7 = vector.load %arg3[%c0_6, %c0_7, %c0_8] : memref<1x128x1xf32, #tpu.memory_space<vmem>>, vector<1x128x1xf32>
    %8 = vector.shape_cast %7 : vector<1x128x1xf32> to vector<128x1xf32>
    %9 = vector.broadcast %8 : vector<128x1xf32> to vector<128x16xf32>
    %10 = arith.mulf %6, %9 : vector<128x16xf32>
    %c0_9 = arith.constant 0 : index
    %c0_10 = arith.constant 0 : index
    %11 = vector.load %arg6[%c0_9, %c0_10] : memref<1x16xf32, #tpu.memory_space<vmem>>, vector<1x16xf32>
    %12 = vector.broadcast %11 : vector<1x16xf32> to vector<128x16xf32>
    %13 = arith.addf %10, %12 : vector<128x16xf32>
    %c0_11 = arith.constant 0 : index
    %c0_12 = arith.constant 0 : index
    %c0_13 = arith.constant 0 : index
    %14 = vector.load %arg7[%c0_11, %c0_12, %c0_13] : memref<1x128x16xf32, #tpu.memory_space<vmem>>, vector<1x128x16xf32>
    %15 = vector.shape_cast %14 : vector<1x128x16xf32> to vector<128x16xf32>
    %16 = vector.shape_cast %13 : vector<128x16xf32> to vector<1x128x16xf32>
    tpu.vector_store %arg7[%c0_11, %c0_12, %c0_13], %16 {strides = array<i32>} : memref<1x128x16xf32, #tpu.memory_space<vmem>>, vector<1x128x16xf32>,
    return
  }
  func.func @transform_0(%arg0: i32, %arg1: i32) -> (i32, i32, i32) {
    %c0_i32 = arith.constant 0 : i32
    %c0_i32_0 = arith.constant 0 : i32
    return %arg0, %arg1, %c0_i32 : i32, i32, i32
  }
  func.func @transform_1(%arg0: i32, %arg1: i32) -> (i32, i32, i32) {
    %c0_i32 = arith.constant 0 : i32
    %c0_i32_0 = arith.constant 0 : i32
    return %arg0, %arg1, %c0_i32 : i32, i32, i32
  }
  func.func @transform_2(%arg0: i32, %arg1: i32) -> (i32, i32) {
    %c0_i32 = arith.constant 0 : i32
    %c0_i32_0 = arith.constant 0 : i32
    %c0_i32_1 = arith.constant 0 : i32
    return %c0_i32, %c0_i32_0 : i32, i32
  }
  func.func @transform_3(%arg0: i32, %arg1: i32) -> (i32, i32) {
    %c0_i32 = arith.constant 0 : i32
    %c0_i32_0 = arith.constant 0 : i32
    %c0_i32_1 = arith.constant 0 : i32
    return %c0_i32, %c0_i32_0 : i32, i32
  }
  func.func @transform_4(%arg0: i32, %arg1: i32) -> (i32, i32) {
    %c0_i32 = arith.constant 0 : i32
    %c0_i32_0 = arith.constant 0 : i32
    %c0_i32_1 = arith.constant 0 : i32
    return %c0_i32, %c0_i32_0 : i32, i32
  }
  func.func @transform_5(%arg0: i32, %arg1: i32) -> (i32, i32, i32) {
    %c0_i32 = arith.constant 0 : i32
    %c0_i32_0 = arith.constant 0 : i32
    return %arg0, %arg1, %c0_i32 : i32, i32, i32
  }
}

</mosaic_0001>

<llo_original>
// kernel: learnable_edge_attention_forward.3
$region0: #{learnable_edge_attention_forward.3}
  #allocation0 [shape = 'u32[]', space=smem, size = 0x4, offset = 0x4, fixed_abs, tag = 'smem constant byte address 0x4 - core index']
  #allocation1 [shape = 'u32[144,128]{1,0:T(1,128)}', space=vmem, size = 0x12000, scoped, tag = 'internal scratch']
  %s0 = inlined_call_operand.vmem [shape: bf16[2,512,16], index: 0, kind: input, shape index: {}]
  %s1 = inlined_call_operand.vmem [shape: bf16[16,16], index: 1, kind: input, shape index: {}]
  %s2 = inlined_call_operand.vmem [shape: bf16[16,16], index: 2, kind: input, shape index: {}]
  %s3 = inlined_call_operand.vmem [shape: f32[1,16], index: 3, kind: input, shape index: {}]
  %s4 = inlined_call_operand.vmem [shape: f32[1,16], index: 4, kind: input, shape index: {}]
  %s5 = inlined_call_operand.vmem [shape: f32[2,1,16], index: 5, kind: input, shape index: {}]
  %s6 = inlined_call_operand.vmem [shape: f32[2,1,16], index: 6, kind: input, shape index: {}]
  %s7 = inlined_call_operand.vmem [shape: bf16[2,512,16], index: 7, kind: output, shape index: {0}]
  %s8 = inlined_call_operand.vmem [shape: f32[2,512,1], index: 8, kind: output, shape index: {1}]
  %9 = xla_tuple %s7, %s8
  %s10 = sld [smem:[#allocation0]]
  $region69: #{learnable_edge_attention_forward.3} parent=0
    _
  %s12 = ssub.s32 1, %s10
  %s13 = scalar_select 0, %s12, %s10
  loop: start=0, step=1, limit=10
  $region2: #{learnable_edge_attention_forward.3} parent=0 // loop_pre_header
    _
  $region3: #{learnable_edge_attention_forward.3} parent=0 // loop_header
    %s15 = sphi 0, %s19
    %p16 = scmp.ge.s32.totalorder %s15, 10
    %s22 = sphi 0, %s34
    %s23 = sphi 0, %s30
    %s24 = sphi 0, %s22
    %s25 = sphi 0, %s23
    %s26 = sphi 0, %s24
    %s27 = sphi 0, %s25
    %s39 = sphi 0, %s41
    %s42 = sphi 0, %s39
    %s43 = sphi 0, %s42
    %s59 = sphi 0, %s43
    %s63 = sphi 0, %s63
    %s65 = sphi 0, %s63
    %s66 = sphi 0, %s65
    %s80 = sphi 0, %s66
    %s84 = sphi 0, %s84
    %s86 = sphi 0, %s84
    %s87 = sphi 0, %s86
    %s101 = sphi 0, %s87
    %s105 = sphi 0, %s105
    %s107 = sphi 0, %s105
    %s108 = sphi 0, %s107
    %s122 = sphi 0, %s108
    %s126 = sphi 0, %s126
    %s128 = sphi 0, %s126
    %s129 = sphi 0, %s128
    %s143 = sphi 0, %s129
    %s149 = sphi 0, %s151
    %s152 = sphi 0, %s149
    %s153 = sphi 0, %s152
    %s169 = sphi 0, %s153
    %s175 = sphi 0, %s177
    %s178 = sphi 0, %s175
    %s179 = sphi 0, %s178
    %s195 = sphi 0, %s179
    %s203 = sphi 0, %s205
    %s206 = sphi 0, %s203
    %s207 = sphi 0, %s206
    %s223 = sphi 0, %s207
    %s231 = sphi 0, %s233
    %s234 = sphi 0, %s231
    %s235 = sphi 0, %s234
    %s251 = sphi 0, %s235
  $region4: #{learnable_edge_attention_forward.3} parent=0 // loop_header_branch
    %18 = sbr.rel (%p16) target = $region8
  $region5: #{learnable_edge_attention_forward.3} parent=0 // loop_body
    %s20 = ssub.s32 %s15, 1
    %s21 = ssub.s32 %s15, 2
    %s28 = sadd.s32 1, %s23
    %p29 = scmp.ge.s32.totalorder %s28, 4
    %s30 = scalar_select %p29, 0, %s28
    %s31 = sadd.s32 1, %s22
    %s32 = scalar_select %p29, %s31, %s22
    %p33 = scmp.ge.s32.totalorder %s32, 2
    %s34 = scalar_select %p33, 0, %s32
    %s35 = ssub.s32 %s22, %s34
    %s36 = ssub.s32 %s23, %s30
    %s37 = sor.u32 %s35, %s36
    %p38 = scmp.eq.s32.totalorder %s37, 0
    %s40 = sadd.s32 %s39, 1
    %s41 = scalar_select %p38, %s39, %s40
    %p44 = pneg %p38
    %p45 = scmp.eq.s32.totalorder %s15, 7
    %p46 = por %p44, %p45
    %p47 = scmp.ne.s32.totalorder %s39, %s42
    %p48 = scmp.eq.s32.totalorder %s15, 0
    %p49 = por %p47, %p48
    %p50 = scmp.ne.s32.totalorder %s39, %s42
    %p51 = scmp.eq.s32.totalorder %s20, 7
    %p52 = por %p50, %p51
    %p53 = scmp.ne.s32.totalorder %s42, %s43
    %p54 = scmp.eq.s32.totalorder %s20, 0
    %p55 = por %p53, %p54
    %p56 = scmp.ne.s32.totalorder %s42, %s43
    %p57 = scmp.eq.s32.totalorder %s21, 7
    %p58 = por %p56, %p57
    %p60 = scmp.ne.s32.totalorder %s43, %s59
    %p61 = scmp.eq.s32.totalorder %s21, 0
    %p62 = por %p60, %p61
    %s64 = sadd.s32 %s63, 1
    %p67 = scmp.eq.s32.totalorder %s15, 7
    %p68 = scmp.ne.s32.totalorder %s63, %s65
    %p69 = scmp.eq.s32.totalorder %s15, 0
    %p70 = por %p68, %p69
    %p71 = scmp.ne.s32.totalorder %s63, %s65
    %p72 = scmp.eq.s32.totalorder %s20, 7
    %p73 = por %p71, %p72
    %p74 = scmp.ne.s32.totalorder %s65, %s66
    %p75 = scmp.eq.s32.totalorder %s20, 0
    %p76 = por %p74, %p75
    %p77 = scmp.ne.s32.totalorder %s65, %s66
    %p78 = scmp.eq.s32.totalorder %s21, 7
    %p79 = por %p77, %p78
    %p81 = scmp.ne.s32.totalorder %s66, %s80
    %p82 = scmp.eq.s32.totalorder %s21, 0
    %p83 = por %p81, %p82
    %s85 = sadd.s32 %s84, 1
    %p88 = scmp.eq.s32.totalorder %s15, 7
    %p89 = scmp.ne.s32.totalorder %s84, %s86
    %p90 = scmp.eq.s32.totalorder %s15, 0
    %p91 = por %p89, %p90
    %p92 = scmp.ne.s32.totalorder %s84, %s86
    %p93 = scmp.eq.s32.totalorder %s20, 7
    %p94 = por %p92, %p93
    %p95 = scmp.ne.s32.totalorder %s86, %s87
    %p96 = scmp.eq.s32.totalorder %s20, 0
    %p97 = por %p95, %p96
    %p98 = scmp.ne.s32.totalorder %s86, %s87
    %p99 = scmp.eq.s32.totalorder %s21, 7
    %p100 = por %p98, %p99
    %p102 = scmp.ne.s32.totalorder %s87, %s101
    %p103 = scmp.eq.s32.totalorder %s21, 0
    %p104 = por %p102, %p103
    %s106 = sadd.s32 %s105, 1
    %p109 = scmp.eq.s32.totalorder %s15, 7
    %p110 = scmp.ne.s32.totalorder %s105, %s107
    %p111 = scmp.eq.s32.totalorder %s15, 0
    %p112 = por %p110, %p111
    %p113 = scmp.ne.s32.totalorder %s105, %s107
    %p114 = scmp.eq.s32.totalorder %s20, 7
    %p115 = por %p113, %p114
    %p116 = scmp.ne.s32.totalorder %s107, %s108
    %p117 = scmp.eq.s32.totalorder %s20, 0
    %p118 = por %p116, %p117
    %p119 = scmp.ne.s32.totalorder %s107, %s108
    %p120 = scmp.eq.s32.totalorder %s21, 7
    %p121 = por %p119, %p120
    %p123 = scmp.ne.s32.totalorder %s108, %s122
    %p124 = scmp.eq.s32.totalorder %s21, 0
    %p125 = por %p123, %p124
    %s127 = sadd.s32 %s126, 1
    %p130 = scmp.eq.s32.totalorder %s15, 7
    %p131 = scmp.ne.s32.totalorder %s126, %s128
    %p132 = scmp.eq.s32.totalorder %s15, 0
    %p133 = por %p131, %p132
    %p134 = scmp.ne.s32.totalorder %s126, %s128
    %p135 = scmp.eq.s32.totalorder %s20, 7
    %p136 = por %p134, %p135
    %p137 = scmp.ne.s32.totalorder %s128, %s129
    %p138 = scmp.eq.s32.totalorder %s20, 0
    %p139 = por %p137, %p138
    %p140 = scmp.ne.s32.totalorder %s128, %s129
    %p141 = scmp.eq.s32.totalorder %s21, 7
    %p142 = por %p140, %p141
    %p144 = scmp.ne.s32.totalorder %s129, %s143
    %p145 = scmp.eq.s32.totalorder %s21, 0
    %p146 = por %p144, %p145
    %s147 = ssub.s32 %s22, %s34
    %p148 = scmp.eq.s32.totalorder %s147, 0
    %s150 = sadd.s32 %s149, 1
    %s151 = scalar_select %p148, %s149, %s150
    %p154 = pneg %p148
    %p155 = scmp.eq.s32.totalorder %s15, 7
    %p156 = por %p154, %p155
    %p157 = scmp.ne.s32.totalorder %s149, %s152
    %p158 = scmp.eq.s32.totalorder %s15, 0
    %p159 = por %p157, %p158
    %p160 = scmp.ne.s32.totalorder %s149, %s152
    %p161 = scmp.eq.s32.totalorder %s20, 7
    %p162 = por %p160, %p161
    %p163 = scmp.ne.s32.totalorder %s152, %s153
    %p164 = scmp.eq.s32.totalorder %s20, 0
    %p165 = por %p163, %p164
    %p166 = scmp.ne.s32.totalorder %s152, %s153
    %p167 = scmp.eq.s32.totalorder %s21, 7
    %p168 = por %p166, %p167
    %p170 = scmp.ne.s32.totalorder %s153, %s169
    %p171 = scmp.eq.s32.totalorder %s21, 0
    %p172 = por %p170, %p171
    %s173 = ssub.s32 %s22, %s34
    %p174 = scmp.eq.s32.totalorder %s173, 0
    %s176 = sadd.s32 %s175, 1
    %s177 = scalar_select %p174, %s175, %s176
    %p180 = pneg %p174
    %p181 = scmp.eq.s32.totalorder %s15, 7
    %p182 = por %p180, %p181
    %p183 = scmp.ne.s32.totalorder %s175, %s178
    %p184 = scmp.eq.s32.totalorder %s15, 0
    %p185 = por %p183, %p184
    %p186 = scmp.ne.s32.totalorder %s175, %s178
    %p187 = scmp.eq.s32.totalorder %s20, 7
    %p188 = por %p186, %p187
    %p189 = scmp.ne.s32.totalorder %s178, %s179
    %p190 = scmp.eq.s32.totalorder %s20, 0
    %p191 = por %p189, %p190
    %p192 = scmp.ne.s32.totalorder %s178, %s179
    %p193 = scmp.eq.s32.totalorder %s21, 7
    %p194 = por %p192, %p193
    %p196 = scmp.ne.s32.totalorder %s179, %s195
    %p197 = scmp.eq.s32.totalorder %s21, 0
    %p198 = por %p196, %p197
    %s199 = ssub.s32 %s22, %s34
    %s200 = ssub.s32 %s23, %s30
    %s201 = sor.u32 %s199, %s200
    %p202 = scmp.eq.s32.totalorder %s201, 0
    %s204 = sadd.s32 %s203, 1
    %s205 = scalar_select %p202, %s203, %s204
    %p208 = pneg %p202
    %p209 = scmp.eq.s32.totalorder %s15, 7
    %p210 = por %p208, %p209
    %p211 = scmp.ne.s32.totalorder %s203, %s206
    %p212 = scmp.eq.s32.totalorder %s15, 0
    %p213 = por %p211, %p212
    %p214 = scmp.ne.s32.totalorder %s203, %s206
    %p215 = scmp.eq.s32.totalorder %s20, 7
    %p216 = por %p214, %p215
    %p217 = scmp.ne.s32.totalorder %s206, %s207
    %p218 = scmp.eq.s32.totalorder %s20, 0
    %p219 = por %p217, %p218
    %p220 = scmp.ne.s32.totalorder %s206, %s207
    %p221 = scmp.eq.s32.totalorder %s21, 7
    %p222 = por %p220, %p221
    %p224 = scmp.ne.s32.totalorder %s207, %s223
    %p225 = scmp.eq.s32.totalorder %s21, 0
    %p226 = por %p224, %p225
    %s227 = ssub.s32 %s22, %s34
    %s228 = ssub.s32 %s23, %s30
    %s229 = sor.u32 %s227, %s228
    %p230 = scmp.eq.s32.totalorder %s229, 0
    %s232 = sadd.s32 %s231, 1
    %s233 = scalar_select %p230, %s231, %s232
    %p236 = pneg %p230
    %p237 = scmp.eq.s32.totalorder %s15, 7
    %p238 = por %p236, %p237
    %p239 = scmp.ne.s32.totalorder %s231, %s234
    %p240 = scmp.eq.s32.totalorder %s15, 0
    %p241 = por %p239, %p240
    %p242 = scmp.ne.s32.totalorder %s231, %s234
    %p243 = scmp.eq.s32.totalorder %s20, 7
    %p244 = por %p242, %p243
    %p245 = scmp.ne.s32.totalorder %s234, %s235
    %p246 = scmp.eq.s32.totalorder %s20, 0
    %p247 = por %p245, %p246
    %p248 = scmp.ne.s32.totalorder %s234, %s235
    %p249 = scmp.eq.s32.totalorder %s21, 7
    %p250 = por %p248, %p249
    %p252 = scmp.ne.s32.totalorder %s235, %s251
    %p253 = scmp.eq.s32.totalorder %s21, 0
    %p254 = por %p252, %p253
    %p255 = scmp.le.s32.totalorder 1, %s15
    %p256 = scmp.lt.s32.totalorder %s15, 9
    %p257 = pnand %p255, %p256
    %p258 = pneg %p257
    // Predicated region
    $region9: #{learnable_edge_attention_forward.3} parent=5 // pred_check
      _
    $region10: #{learnable_edge_attention_forward.3} parent=5 // pred_check_branch
      %260 = sbr.rel (%p257) target = $region12
    $region11: #{learnable_edge_attention_forward.3} parent=5 // pred_region
      %s261 = ssub.s32 %s15, 1
      // Predicated region
      $region13: #{learnable_edge_attention_forward.3} parent=11 // pred_check
        %p262 = pneg %p76
      $region14: #{learnable_edge_attention_forward.3} parent=11 // pred_check_branch
        %264 = sbr.rel (%p262) target = $region16
      $region15: #{learnable_edge_attention_forward.3} parent=11 // pred_region
        _
      $region16: #{learnable_edge_attention_forward.3} parent=11 // pred_fallthru
        _
      // Predicated region
      $region17: #{learnable_edge_attention_forward.3} parent=11 // pred_check
        %p265 = pneg %p97
      $region18: #{learnable_edge_attention_forward.3} parent=11 // pred_check_branch
        %267 = sbr.rel (%p265) target = $region20
      $region19: #{learnable_edge_attention_forward.3} parent=11 // pred_region
        _
      $region20: #{learnable_edge_attention_forward.3} parent=11 // pred_fallthru
        _
      // Predicated region
      $region21: #{learnable_edge_attention_forward.3} parent=11 // pred_check
        %p268 = pneg %p118
      $region22: #{learnable_edge_attention_forward.3} parent=11 // pred_check_branch
        %270 = sbr.rel (%p268) target = $region24
      $region23: #{learnable_edge_attention_forward.3} parent=11 // pred_region
        _
      $region24: #{learnable_edge_attention_forward.3} parent=11 // pred_fallthru
        _
      // Predicated region
      $region25: #{learnable_edge_attention_forward.3} parent=11 // pred_check
        %p271 = pneg %p139
      $region26: #{learnable_edge_attention_forward.3} parent=11 // pred_check_branch
        %273 = sbr.rel (%p271) target = $region28
      $region27: #{learnable_edge_attention_forward.3} parent=11 // pred_region
        _
      $region28: #{learnable_edge_attention_forward.3} parent=11 // pred_fallthru
        _
    $region12: #{learnable_edge_attention_forward.3} parent=5 // pred_fallthru
      _
    %p274 = scmp.lt.s32.totalorder %s15, 8
    // Predicated region
    $region29: #{learnable_edge_attention_forward.3} parent=5 // pred_check
      %p275 = pneg %p274
    $region30: #{learnable_edge_attention_forward.3} parent=5 // pred_check_branch
      %277 = sbr.rel (%p275) target = $region32
    $region31: #{learnable_edge_attention_forward.3} parent=5 // pred_region
      // Predicated region
      $region33: #{learnable_edge_attention_forward.3} parent=31 // pred_check
        %p278 = pneg %p49
      $region34: #{learnable_edge_attention_forward.3} parent=31 // pred_check_branch
        %280 = sbr.rel (%p278) target = $region36
      $region35: #{learnable_edge_attention_forward.3} parent=31 // pred_region
        %s281 = smul.u32 16, %s23
        %p282 = scmp.lt.s32.totalorder %s22, 1
        %s283 = scalar_select %p282, %s22, 1
        %p284 = scmp.lt.s32.totalorder %s281, 63
        %s285 = scalar_select %p284, %s281, 63
        %s286 = smul.addr %s283, 64
        %s287 = sadd.s32 %s285, %s286
        %s288 = smul.addr %s287, 4
        %s289 = scalar_lea.vmem %s0, %s288
        %s290 = smul.u32 16, %s23
      $region36: #{learnable_edge_attention_forward.3} parent=31 // pred_fallthru
        _
      // Predicated region
      $region37: #{learnable_edge_attention_forward.3} parent=31 // pred_check
        %p291 = pneg %p159
      $region38: #{learnable_edge_attention_forward.3} parent=31 // pred_check_branch
        %293 = sbr.rel (%p291) target = $region40
      $region39: #{learnable_edge_attention_forward.3} parent=31 // pred_region
        %p294 = scmp.lt.s32.totalorder %s22, 1
        %s295 = scalar_select %p294, %s22, 1
        %s296 = scalar_lea.vmem %s5, %s295
      $region40: #{learnable_edge_attention_forward.3} parent=31 // pred_fallthru
        _
      // Predicated region
      $region41: #{learnable_edge_attention_forward.3} parent=31 // pred_check
        %p297 = pneg %p185
      $region42: #{learnable_edge_attention_forward.3} parent=31 // pred_check_branch
        %299 = sbr.rel (%p297) target = $region44
      $region43: #{learnable_edge_attention_forward.3} parent=31 // pred_region
        %p300 = scmp.lt.s32.totalorder %s22, 1
        %s301 = scalar_select %p300, %s22, 1
        %s302 = scalar_lea.vmem %s6, %s301
      $region44: #{learnable_edge_attention_forward.3} parent=31 // pred_fallthru
        _
    $region32: #{learnable_edge_attention_forward.3} parent=5 // pred_fallthru
      _
    %p303 = scmp.le.s32.totalorder 1, %s15
    %p304 = scmp.lt.s32.totalorder %s15, 9
    %p305 = pnand %p303, %p304
    %p306 = pneg %p305
    // Predicated region
    $region45: #{learnable_edge_attention_forward.3} parent=5 // pred_check
      _
    $region46: #{learnable_edge_attention_forward.3} parent=5 // pred_check_branch
      %308 = sbr.rel (%p305) target = $region48
    $region47: #{learnable_edge_attention_forward.3} parent=5 // pred_region
      %s309 = ssub.s32 %s15, 1
      %s310 = smul.u32 16, %s25
      %p311 = scmp.lt.s32.totalorder %s24, 1
      %s312 = scalar_select %p311, %s24, 1
      %p313 = scmp.lt.s32.totalorder %s310, 63
      %s314 = scalar_select %p313, %s310, 63
      %s315 = smul.addr %s312, 64
      %s316 = sadd.s32 %s314, %s315
      %s317 = smul.addr %s316, 4
      %s318 = scalar_lea.vmem %s0, %s317
      %p319 = pneg %p55
      %p320 = pneg %p52
      %p321 = pneg %p76
      %p322 = pneg %p73
      %p323 = pneg %p97
      %p324 = pneg %p94
      %p325 = pneg %p118
      %p326 = pneg %p115
      %p327 = pneg %p139
      %p328 = pneg %p136
      %p329 = scmp.lt.s32.totalorder %s24, 1
      %s330 = scalar_select %p329, %s24, 1
      %s331 = scalar_lea.vmem %s5, %s330
      %p332 = pneg %p165
      %p333 = pneg %p162
      %p334 = scmp.lt.s32.totalorder %s24, 1
      %s335 = scalar_select %p334, %s24, 1
      %s336 = scalar_lea.vmem %s6, %s335
      %p337 = pneg %p191
      %p338 = pneg %p188
      %p339 = pneg %p219
      %p340 = pneg %p216
      %s341 = smul.u32 16, %s25
      %p342 = scmp.lt.s32.totalorder %s24, 1
      %s343 = scalar_select %p342, %s24, 1
      %p344 = scmp.lt.s32.totalorder %s341, 63
      %s345 = scalar_select %p344, %s341, 63
      %s346 = smul.addr %s343, 64
      %s347 = sadd.s32 %s345, %s346
      %s348 = smul.addr %s347, 4
      %s349 = scalar_lea.vmem %s7, %s348
      %p350 = pneg %p247
      %p351 = pneg %p244
      %s352 = smul.u32 16, %s25
      %p353 = scmp.lt.s32.totalorder %s24, 1
      %s354 = scalar_select %p353, %s24, 1
      %p355 = scmp.lt.s32.totalorder %s352, 63
      %s356 = scalar_select %p355, %s352, 63
      %s357 = smul.addr %s354, 64
      %s358 = sadd.s32 %s356, %s357
      %s359 = smul.addr %s358, 8
      %s360 = scalar_lea.vmem %s8, %s359
      %s361 = smul.u32 16, %s25
      %p362 = scmp.lt.s32.totalorder %s24, 1
      %s363 = scalar_select %p362, %s24, 1
      %p364 = scmp.lt.s32.totalorder %s361, 63
      %s365 = scalar_select %p364, %s361, 63
      %s366 = smul.addr %s363, 64
      %s367 = sadd.s32 %s365, %s366
      %s368 = smul.addr %s367, 4
      %s369 = scalar_lea.vmem %s0, %s368
      %s370 = smul.u32 16, %s25
      %p371 = scmp.lt.s32.totalorder %s24, 1
      %s372 = scalar_select %p371, %s24, 1
      %s373 = scalar_lea.vmem %s5, %s372
      %p374 = scmp.lt.s32.totalorder %s24, 1
      %s375 = scalar_select %p374, %s24, 1
      %s376 = scalar_lea.vmem %s6, %s375
      %s377 = smul.u32 16, %s25
      %p378 = scmp.lt.s32.totalorder %s24, 1
      %s379 = scalar_select %p378, %s24, 1
      %p380 = scmp.lt.s32.totalorder %s377, 63
      %s381 = scalar_select %p380, %s377, 63
      %s382 = smul.addr %s379, 64
      %s383 = sadd.s32 %s381, %s382
      %s384 = smul.addr %s383, 4
      %s385 = scalar_lea.vmem %s7, %s384
      %s386 = smul.u32 16, %s25
      %s387 = smul.u32 16, %s25
      %p388 = scmp.lt.s32.totalorder %s24, 1
      %s389 = scalar_select %p388, %s24, 1
      %p390 = scmp.lt.s32.totalorder %s387, 63
      %s391 = scalar_select %p390, %s387, 63
      %s392 = smul.addr %s389, 64
      %s393 = sadd.s32 %s391, %s392
      %s394 = smul.addr %s393, 8
      %s395 = scalar_lea.vmem %s8, %s394
      %s396 = smul.u32 16, %s25
      %v398 = vld [vmem:[%s369] sm:$0xf]
      %v399 = vld [vmem:[%s369 + $0x4] sm:$0xf]
      %v400 = vld [vmem:[%s369 + $0x8] sm:$0xf]
      %v401 = vld [vmem:[%s369 + $0xc] sm:$0xf]
      %v402 = vld [vmem:[%s369 + $0x10] sm:$0xf]
      %v403 = vld [vmem:[%s369 + $0x14] sm:$0xf]
      %v404 = vld [vmem:[%s369 + $0x18] sm:$0xf]
      %v405 = vld [vmem:[%s369 + $0x1c] sm:$0xf]
      %v406 = vld [vmem:[%s369 + $0x20] sm:$0xf]
      %v407 = vld [vmem:[%s369 + $0x24] sm:$0xf]
      %v408 = vld [vmem:[%s369 + $0x28] sm:$0xf]
      %v409 = vld [vmem:[%s369 + $0x2c] sm:$0xf]
      %v410 = vld [vmem:[%s369 + $0x30] sm:$0xf]
      %v411 = vld [vmem:[%s369 + $0x34] sm:$0xf]
      %v412 = vld [vmem:[%s369 + $0x38] sm:$0xf]
      %v413 = vld [vmem:[%s369 + $0x3c] sm:$0xf]
      %v414 = vld [vmem:[%s1] sm:$0xf]
      %v415 = vld [vmem:[%s1 + $0x4] sm:$0xf]
      %v416 = vld [vmem:[%s3] sm:$0x1]
      %v418 = vlaneseq
      %v419 = vshrl.u32 %v418, 7
      %v420 = vsub.s32 0, %v419
      %v421 = vrot.slane %v416, %v420
      %v439 = vunpack.c.l.b16 %v398
      %v440 = vunpack.c.l.b16 %v399
      %v441 = vunpack.c.l.b16 %v400
      %v442 = vunpack.c.l.b16 %v401
      %v443 = vunpack.c.l.b16 %v402
      %v444 = vunpack.c.l.b16 %v403
      %v445 = vunpack.c.l.b16 %v404
      %v446 = vunpack.c.l.b16 %v405
      %v447 = vunpack.c.l.b16 %v406
      %v448 = vunpack.c.l.b16 %v407
      %v449 = vunpack.c.l.b16 %v408
      %v450 = vunpack.c.l.b16 %v409
      %v451 = vunpack.c.l.b16 %v410
      %v452 = vunpack.c.l.b16 %v411
      %v453 = vunpack.c.l.b16 %v412
      %v454 = vunpack.c.l.b16 %v413
      %v455 = vpack.c.b16 %v440, %v439
      %v456 = vpack.c.b16 %v442, %v441
      %v457 = vpack.c.b16 %v444, %v443
      %v458 = vpack.c.b16 %v446, %v445
      %v459 = vpack.c.b16 %v448, %v447
      %v460 = vpack.c.b16 %v450, %v449
      %v461 = vpack.c.b16 %v452, %v451
      %v462 = vpack.c.b16 %v454, %v453
      %v465 = vunpack.c.l.b16 %v414
      %v466 = vunpack.c.l.b16 %v415
      %v467 = vpack.c.b16 %v466, %v465
      %vm469 = vcmask 130048
      %v471 = vsel %vm469, %v455, 0
      %v474 = vsel %vm469, %v456, 0
      %v477 = vsel %vm469, %v457, 0
      %v480 = vsel %vm469, %v458, 0
      %v483 = vsel %vm469, %v459, 0
      %v486 = vsel %vm469, %v460, 0
      %v489 = vsel %vm469, %v461, 0
      %v492 = vsel %vm469, %v462, 0
      %494 = vmatprep.subr.bf16.mxu0 0
      %495 = vmatpush1.bf16.msra.mxu0 0
      %496 = vmatprep.subr.bf16.mxu0 0
      %497 = vmatpush1.bf16.msra.mxu0 0
      %498 = vmatprep.subr.bf16.mxu0 0
      %499 = vmatpush1.bf16.msra.mxu0 0
      %500 = vmatprep.subr.bf16.mxu0 0
      %501 = vmatpush1.bf16.msra.mxu0 0
      %502 = vmatprep.subr.bf16.mxu0 0
      %503 = vmatpush1.bf16.msra.mxu0 0
      %504 = vmatprep.subr.bf16.mxu0 0
      %505 = vmatpush1.bf16.msra.mxu0 0
      %506 = vmatprep.subr.bf16.mxu0 0
      %507 = vmatpush1.bf16.msra.mxu0 0
      %508 = vmatprep.subr.bf16.mxu0 0
      %509 = vmatpush1.bf16.msra.mxu0 %v467
      %510 = vmatprep.subr.bf16.mxu0 0
      %511 = vmatpush2.bf16.msra.mxu0 0
      %512 = vmatprep.subr.bf16.mxu0 0
      %513 = vmatpush2.bf16.msra.mxu0 0
      %514 = vmatprep.subr.bf16.mxu0 0
      %515 = vmatpush2.bf16.msra.mxu0 0
      %516 = vmatprep.subr.bf16.mxu0 0
      %517 = vmatpush2.bf16.msra.mxu0 0
      %518 = vmatprep.subr.bf16.mxu0 0
      %519 = vmatpush2.bf16.msra.mxu0 0
      %520 = vmatprep.subr.bf16.mxu0 0
      %521 = vmatpush2.bf16.msra.mxu0 0
      %522 = vmatprep.subr.bf16.mxu0 0
      %523 = vmatpush2.bf16.msra.mxu0 0
      %524 = vmatprep.subr.bf16.mxu0 0
      %525 = vmatpush2.bf16.msra.mxu0 0
      %526 = vmatprep.mubr.bf16.mxu0 0
      %527 = vmatmul.mubr.bf16.gmra.mxu0 %v471
      %v528 = vpop.f32.mrf.mxu0
      %v529 = vadd.f32 %v421, %v528
      %v530 = vpop.f32.mrf.mxu0
      %v531 = vpop.f32.mrf.mxu0
      %v532 = vadd.f32 %v421, %v531
      %v533 = vpop.f32.mrf.mxu0
      %534 = vmatprep.mubr.bf16.mxu0 0
      %535 = vmatmul.mubr.bf16.gmra.mxu0 %v474
      %v536 = vpop.f32.mrf.mxu0
      %v537 = vadd.f32 %v421, %v536
      %v538 = vpop.f32.mrf.mxu0
      %v539 = vpop.f32.mrf.mxu0
      %v540 = vadd.f32 %v421, %v539
      %v541 = vpop.f32.mrf.mxu0
      %542 = vmatprep.mubr.bf16.mxu0 0
      %543 = vmatmul.mubr.bf16.gmra.mxu0 %v477
      %v544 = vpop.f32.mrf.mxu0
      %v545 = vadd.f32 %v421, %v544
      %v546 = vpop.f32.mrf.mxu0
      %v547 = vpop.f32.mrf.mxu0
      %v548 = vadd.f32 %v421, %v547
      %v549 = vpop.f32.mrf.mxu0
      %550 = vmatprep.mubr.bf16.mxu0 0
      %551 = vmatmul.mubr.bf16.gmra.mxu0 %v480
      %v552 = vpop.f32.mrf.mxu0
      %v553 = vadd.f32 %v421, %v552
      %v554 = vpop.f32.mrf.mxu0
      %v555 = vpop.f32.mrf.mxu0
      %v556 = vadd.f32 %v421, %v555
      %v557 = vpop.f32.mrf.mxu0
      %558 = vmatprep.mubr.bf16.mxu0 0
      %559 = vmatmul.mubr.bf16.gmra.mxu0 %v483
      %v560 = vpop.f32.mrf.mxu0
      %v561 = vadd.f32 %v421, %v560
      %v562 = vpop.f32.mrf.mxu0
      %v563 = vpop.f32.mrf.mxu0
      %v564 = vadd.f32 %v421, %v563
      %v565 = vpop.f32.mrf.mxu0
      %566 = vmatprep.mubr.bf16.mxu0 0
      %567 = vmatmul.mubr.bf16.gmra.mxu0 %v486
      %v568 = vpop.f32.mrf.mxu0
      %v569 = vadd.f32 %v421, %v568
      %v570 = vpop.f32.mrf.mxu0
      %v571 = vpop.f32.mrf.mxu0
      %v572 = vadd.f32 %v421, %v571
      %v573 = vpop.f32.mrf.mxu0
      %574 = vmatprep.mubr.bf16.mxu0 0
      %575 = vmatmul.mubr.bf16.gmra.mxu0 %v489
      %v576 = vpop.f32.mrf.mxu0
      %v577 = vadd.f32 %v421, %v576
      %v578 = vpop.f32.mrf.mxu0
      %v579 = vpop.f32.mrf.mxu0
      %v580 = vadd.f32 %v421, %v579
      %v581 = vpop.f32.mrf.mxu0
      %582 = vmatprep.mubr.bf16.mxu0 0
      %583 = vmatmul.mubr.bf16.gmra.mxu0 %v492
      %v584 = vpop.f32.mrf.mxu0
      %v585 = vadd.f32 %v421, %v584
      %v586 = vpop.f32.mrf.mxu0
      %v587 = vpop.f32.mrf.mxu0
      %v588 = vadd.f32 %v421, %v587
      %v589 = vpop.f32.mrf.mxu0
      %590 = vdwg.mxu0
      %v591 = vld [vmem:[%s2] sm:$0xf]
      %v592 = vld [vmem:[%s2 + $0x4] sm:$0xf]
      %v593 = vld [vmem:[%s4] sm:$0x1]
      %v595 = vlaneseq
      %v596 = vshrl.u32 %v595, 7
      %v597 = vsub.s32 0, %v596
      %v598 = vrot.slane %v593, %v597
      %v602 = vunpack.c.l.b16 %v591
      %v603 = vunpack.c.l.b16 %v592
      %v604 = vpack.c.b16 %v603, %v602
      %606 = vmatprep.subr.bf16.mxu0 0
      %607 = vmatpush1.bf16.msra.mxu0 0
      %608 = vmatprep.subr.bf16.mxu0 0
      %609 = vmatpush1.bf16.msra.mxu0 0
      %610 = vmatprep.subr.bf16.mxu0 0
      %611 = vmatpush1.bf16.msra.mxu0 0
      %612 = vmatprep.subr.bf16.mxu0 0
      %613 = vmatpush1.bf16.msra.mxu0 0
      %614 = vmatprep.subr.bf16.mxu0 0
      %615 = vmatpush1.bf16.msra.mxu0 0
      %616 = vmatprep.subr.bf16.mxu0 0
      %617 = vmatpush1.bf16.msra.mxu0 0
      %618 = vmatprep.subr.bf16.mxu0 0
      %619 = vmatpush1.bf16.msra.mxu0 0
      %620 = vmatprep.subr.bf16.mxu0 0
      %621 = vmatpush1.bf16.msra.mxu0 %v604
      %622 = vmatprep.subr.bf16.mxu0 0
      %623 = vmatpush2.bf16.msra.mxu0 0
      %624 = vmatprep.subr.bf16.mxu0 0
      %625 = vmatpush2.bf16.msra.mxu0 0
      %626 = vmatprep.subr.bf16.mxu0 0
      %627 = vmatpush2.bf16.msra.mxu0 0
      %628 = vmatprep.subr.bf16.mxu0 0
      %629 = vmatpush2.bf16.msra.mxu0 0
      %630 = vmatprep.subr.bf16.mxu0 0
      %631 = vmatpush2.bf16.msra.mxu0 0
      %632 = vmatprep.subr.bf16.mxu0 0
      %633 = vmatpush2.bf16.msra.mxu0 0
      %634 = vmatprep.subr.bf16.mxu0 0
      %635 = vmatpush2.bf16.msra.mxu0 0
      %636 = vmatprep.subr.bf16.mxu0 0
      %637 = vmatpush2.bf16.msra.mxu0 0
      %638 = vmatprep.mubr.bf16.mxu0 0
      %639 = vmatmul.mubr.bf16.gmra.mxu0 %v471
      %v640 = vpop.f32.mrf.mxu0
      %v641 = vadd.f32 %v598, %v640
      %v642 = vpop.f32.mrf.mxu0
      %v643 = vpop.f32.mrf.mxu0
      %v644 = vadd.f32 %v598, %v643
      %v645 = vpop.f32.mrf.mxu0
      %646 = vmatprep.mubr.bf16.mxu0 0
      %647 = vmatmul.mubr.bf16.gmra.mxu0 %v474
      %v648 = vpop.f32.mrf.mxu0
      %v649 = vadd.f32 %v598, %v648
      %v650 = vpop.f32.mrf.mxu0
      %v651 = vpop.f32.mrf.mxu0
      %v652 = vadd.f32 %v598, %v651
      %v653 = vpop.f32.mrf.mxu0
      %654 = vmatprep.mubr.bf16.mxu0 0
      %655 = vmatmul.mubr.bf16.gmra.mxu0 %v477
      %v656 = vpop.f32.mrf.mxu0
      %v657 = vadd.f32 %v598, %v656
      %v658 = vpop.f32.mrf.mxu0
      %v659 = vpop.f32.mrf.mxu0
      %v660 = vadd.f32 %v598, %v659
      %v661 = vpop.f32.mrf.mxu0
      %662 = vmatprep.mubr.bf16.mxu0 0
      %663 = vmatmul.mubr.bf16.gmra.mxu0 %v480
      %v664 = vpop.f32.mrf.mxu0
      %v665 = vadd.f32 %v598, %v664
      %v666 = vpop.f32.mrf.mxu0
      %v667 = vpop.f32.mrf.mxu0
      %v668 = vadd.f32 %v598, %v667
      %v669 = vpop.f32.mrf.mxu0
      %670 = vmatprep.mubr.bf16.mxu0 0
      %671 = vmatmul.mubr.bf16.gmra.mxu0 %v483
      %v672 = vpop.f32.mrf.mxu0
      %v673 = vadd.f32 %v598, %v672
      %v674 = vpop.f32.mrf.mxu0
      %v675 = vpop.f32.mrf.mxu0
      %v676 = vadd.f32 %v598, %v675
      %v677 = vpop.f32.mrf.mxu0
      %678 = vmatprep.mubr.bf16.mxu0 0
      %679 = vmatmul.mubr.bf16.gmra.mxu0 %v486
      %v680 = vpop.f32.mrf.mxu0
      %v681 = vadd.f32 %v598, %v680
      %v682 = vpop.f32.mrf.mxu0
      %v683 = vpop.f32.mrf.mxu0
      %v684 = vadd.f32 %v598, %v683
      %v685 = vpop.f32.mrf.mxu0
      %686 = vmatprep.mubr.bf16.mxu0 0
      %687 = vmatmul.mubr.bf16.gmra.mxu0 %v489
      %v688 = vpop.f32.mrf.mxu0
      %v689 = vadd.f32 %v598, %v688
      %v690 = vpop.f32.mrf.mxu0
      %v691 = vpop.f32.mrf.mxu0
      %v692 = vadd.f32 %v598, %v691
      %v693 = vpop.f32.mrf.mxu0
      %694 = vmatprep.mubr.bf16.mxu0 0
      %695 = vmatmul.mubr.bf16.gmra.mxu0 %v492
      %v696 = vpop.f32.mrf.mxu0
      %v697 = vadd.f32 %v598, %v696
      %v698 = vpop.f32.mrf.mxu0
      %v699 = vpop.f32.mrf.mxu0
      %v700 = vadd.f32 %v598, %v699
      %v701 = vpop.f32.mrf.mxu0
      %702 = vdwg.mxu0
      %v703 = vmul.f32 %v529, %v641
      %v704 = vmul.f32 %v532, %v644
      %v705 = vmul.f32 %v537, %v649
      %v706 = vmul.f32 %v540, %v652
      %v707 = vmul.f32 %v545, %v657
      %v708 = vmul.f32 %v548, %v660
      %v709 = vmul.f32 %v553, %v665
      %v710 = vmul.f32 %v556, %v668
      %v711 = vmul.f32 %v561, %v673
      %v712 = vmul.f32 %v564, %v676
      %v713 = vmul.f32 %v569, %v681
      %v714 = vmul.f32 %v572, %v684
      %v715 = vmul.f32 %v577, %v689
      %v716 = vmul.f32 %v580, %v692
      %v717 = vmul.f32 %v585, %v697
      %v718 = vmul.f32 %v588, %v700
      %v719 = vsel %vm469, %v703, 0.0
      %720 = vadd.xlane.f32.xlu0 %v719
      %v721 = vpop.xlane.xlu0 %720
      %v722 = vsel %vm469, %v704, 0.0
      %723 = vadd.xlane.f32.xlu0 %v722
      %v724 = vpop.xlane.xlu0 %723
      %v725 = vsel %vm469, %v705, 0.0
      %726 = vadd.xlane.f32.xlu0 %v725
      %v727 = vpop.xlane.xlu0 %726
      %v728 = vsel %vm469, %v706, 0.0
      %729 = vadd.xlane.f32.xlu0 %v728
      %v730 = vpop.xlane.xlu0 %729
      %v731 = vsel %vm469, %v707, 0.0
      %732 = vadd.xlane.f32.xlu0 %v731
      %v733 = vpop.xlane.xlu0 %732
      %v734 = vsel %vm469, %v708, 0.0
      %735 = vadd.xlane.f32.xlu0 %v734
      %v736 = vpop.xlane.xlu0 %735
      %v737 = vsel %vm469, %v709, 0.0
      %738 = vadd.xlane.f32.xlu0 %v737
      %v739 = vpop.xlane.xlu0 %738
      %v740 = vsel %vm469, %v710, 0.0
      %741 = vadd.xlane.f32.xlu0 %v740
      %v742 = vpop.xlane.xlu0 %741
      %v743 = vsel %vm469, %v711, 0.0
      %744 = vadd.xlane.f32.xlu0 %v743
      %v745 = vpop.xlane.xlu0 %744
      %v746 = vsel %vm469, %v712, 0.0
      %747 = vadd.xlane.f32.xlu0 %v746
      %v748 = vpop.xlane.xlu0 %747
      %v749 = vsel %vm469, %v713, 0.0
      %750 = vadd.xlane.f32.xlu0 %v749
      %v751 = vpop.xlane.xlu0 %750
      %v752 = vsel %vm469, %v714, 0.0
      %753 = vadd.xlane.f32.xlu0 %v752
      %v754 = vpop.xlane.xlu0 %753
      %v755 = vsel %vm469, %v715, 0.0
      %756 = vadd.xlane.f32.xlu0 %v755
      %v757 = vpop.xlane.xlu0 %756
      %v758 = vsel %vm469, %v716, 0.0
      %759 = vadd.xlane.f32.xlu0 %v758
      %v760 = vpop.xlane.xlu0 %759
      %v761 = vsel %vm469, %v717, 0.0
      %762 = vadd.xlane.f32.xlu0 %v761
      %v763 = vpop.xlane.xlu0 %762
      %v764 = vsel %vm469, %v718, 0.0
      %765 = vadd.xlane.f32.xlu0 %v764
      %v766 = vpop.xlane.xlu0 %765
      %v767 = vmul.f32 %v721, 0.25
      %v768 = vmul.f32 %v724, 0.25
      %v769 = vmul.f32 %v727, 0.25
      %v770 = vmul.f32 %v730, 0.25
      %v771 = vmul.f32 %v733, 0.25
      %v772 = vmul.f32 %v736, 0.25
      %v773 = vmul.f32 %v739, 0.25
      %v774 = vmul.f32 %v742, 0.25
      %v775 = vmul.f32 %v745, 0.25
      %v776 = vmul.f32 %v748, 0.25
      %v777 = vmul.f32 %v751, 0.25
      %v778 = vmul.f32 %v754, 0.25
      %v779 = vmul.f32 %v757, 0.25
      %v780 = vmul.f32 %v760, 0.25
      %v781 = vmul.f32 %v763, 0.25
      %v782 = vmul.f32 %v766, 0.25
      %vm783 = vcmask 7168
      %784 = vst.msk [vmem:[%s395] sm:$0xff] %vm783, %v767
      %785 = vst.msk [vmem:[%s395 + $0x8] sm:$0xff] %vm783, %v768
      %786 = vst.msk [vmem:[%s395 + $0x10] sm:$0xff] %vm783, %v769
      %787 = vst.msk [vmem:[%s395 + $0x18] sm:$0xff] %vm783, %v770
      %788 = vst.msk [vmem:[%s395 + $0x20] sm:$0xff] %vm783, %v771
      %789 = vst.msk [vmem:[%s395 + $0x28] sm:$0xff] %vm783, %v772
      %790 = vst.msk [vmem:[%s395 + $0x30] sm:$0xff] %vm783, %v773
      %791 = vst.msk [vmem:[%s395 + $0x38] sm:$0xff] %vm783, %v774
      %792 = vst.msk [vmem:[%s395 + $0x40] sm:$0xff] %vm783, %v775
      %793 = vst.msk [vmem:[%s395 + $0x48] sm:$0xff] %vm783, %v776
      %794 = vst.msk [vmem:[%s395 + $0x50] sm:$0xff] %vm783, %v777
      %795 = vst.msk [vmem:[%s395 + $0x58] sm:$0xff] %vm783, %v778
      %796 = vst.msk [vmem:[%s395 + $0x60] sm:$0xff] %vm783, %v779
      %797 = vst.msk [vmem:[%s395 + $0x68] sm:$0xff] %vm783, %v780
      %798 = vst.msk [vmem:[%s395 + $0x70] sm:$0xff] %vm783, %v781
      %799 = vst.msk [vmem:[%s395 + $0x78] sm:$0xff] %vm783, %v782
      %v800 = vld [vmem:[%s373] sm:$0x1]
      %v802 = vlaneseq
      %v803 = vshrl.u32 %v802, 7
      %v804 = vsub.s32 0, %v803
      %v805 = vrot.slane %v800, %v804
      %v807 = vmul.f32 %v529, %v805
      %v808 = vmul.f32 %v532, %v805
      %v809 = vmul.f32 %v537, %v805
      %v810 = vmul.f32 %v540, %v805
      %v811 = vmul.f32 %v545, %v805
      %v812 = vmul.f32 %v548, %v805
      %v813 = vmul.f32 %v553, %v805
      %v814 = vmul.f32 %v556, %v805
      %v815 = vmul.f32 %v561, %v805
      %v816 = vmul.f32 %v564, %v805
      %v817 = vmul.f32 %v569, %v805
      %v818 = vmul.f32 %v572, %v805
      %v819 = vmul.f32 %v577, %v805
      %v820 = vmul.f32 %v580, %v805
      %v821 = vmul.f32 %v585, %v805
      %v822 = vmul.f32 %v588, %v805
      %v823 = vld [vmem:[%s376] sm:$0x1]
      %v825 = vlaneseq
      %v826 = vshrl.u32 %v825, 7
      %v827 = vsub.s32 0, %v826
      %v828 = vrot.slane %v823, %v827
      %vm830 = vcmp.ge.f32.partialorder %v807, %v828
      %vm831 = vcmp.ge.f32.partialorder %v808, %v828
      %vm832 = vcmp.ge.f32.partialorder %v809, %v828
      %vm833 = vcmp.ge.f32.partialorder %v810, %v828
      %vm834 = vcmp.ge.f32.partialorder %v811, %v828
      %vm835 = vcmp.ge.f32.partialorder %v812, %v828
      %vm836 = vcmp.ge.f32.partialorder %v813, %v828
      %vm837 = vcmp.ge.f32.partialorder %v814, %v828
      %vm838 = vcmp.ge.f32.partialorder %v815, %v828
      %vm839 = vcmp.ge.f32.partialorder %v816, %v828
      %vm840 = vcmp.ge.f32.partialorder %v817, %v828
      %vm841 = vcmp.ge.f32.partialorder %v818, %v828
      %vm842 = vcmp.ge.f32.partialorder %v819, %v828
      %vm843 = vcmp.ge.f32.partialorder %v820, %v828
      %vm844 = vcmp.ge.f32.partialorder %v821, %v828
      %vm845 = vcmp.ge.f32.partialorder %v822, %v828
      %v846 = vsel %vm830, 1.0, 0.0
      %v847 = vsel %vm831, 1.0, 0.0
      %v848 = vsel %vm832, 1.0, 0.0
      %v849 = vsel %vm833, 1.0, 0.0
      %v850 = vsel %vm834, 1.0, 0.0
      %v851 = vsel %vm835, 1.0, 0.0
      %v852 = vsel %vm836, 1.0, 0.0
      %v853 = vsel %vm837, 1.0, 0.0
      %v854 = vsel %vm838, 1.0, 0.0
      %v855 = vsel %vm839, 1.0, 0.0
      %v856 = vsel %vm840, 1.0, 0.0
      %v857 = vsel %vm841, 1.0, 0.0
      %v858 = vsel %vm842, 1.0, 0.0
      %v859 = vsel %vm843, 1.0, 0.0
      %v860 = vsel %vm844, 1.0, 0.0
      %v861 = vsel %vm845, 1.0, 0.0
      %v862 = vpack.c.bf16 %v847, %v846
      %v863 = vpack.c.bf16 %v849, %v848
      %v864 = vpack.c.bf16 %v851, %v850
      %v865 = vpack.c.bf16 %v853, %v852
      %v866 = vpack.c.bf16 %v855, %v854
      %v867 = vpack.c.bf16 %v857, %v856
      %v868 = vpack.c.bf16 %v859, %v858
      %v869 = vpack.c.bf16 %v861, %v860
      %v878 = vunpack.c.l.b16 %v862
      %v879 = vunpack.c.h.b16 %v862
      %v880 = vunpack.c.l.b16 %v863
      %v881 = vunpack.c.h.b16 %v863
      %v882 = vunpack.c.l.b16 %v864
      %v883 = vunpack.c.h.b16 %v864
      %v884 = vunpack.c.l.b16 %v865
      %v885 = vunpack.c.h.b16 %v865
      %v886 = vunpack.c.l.b16 %v866
      %v887 = vunpack.c.h.b16 %v866
      %v888 = vunpack.c.l.b16 %v867
      %v889 = vunpack.c.h.b16 %v867
      %v890 = vunpack.c.l.b16 %v868
      %v891 = vunpack.c.h.b16 %v868
      %v892 = vunpack.c.l.b16 %v869
      %v893 = vunpack.c.h.b16 %v869
      %v894 = vpack.c.b16 %v878, %v878
      %v895 = vpack.c.b16 %v879, %v879
      %v896 = vpack.c.b16 %v880, %v880
      %v897 = vpack.c.b16 %v881, %v881
      %v898 = vpack.c.b16 %v882, %v882
      %v899 = vpack.c.b16 %v883, %v883
      %v900 = vpack.c.b16 %v884, %v884
      %v901 = vpack.c.b16 %v885, %v885
      %v902 = vpack.c.b16 %v886, %v886
      %v903 = vpack.c.b16 %v887, %v887
      %v904 = vpack.c.b16 %v888, %v888
      %v905 = vpack.c.b16 %v889, %v889
      %v906 = vpack.c.b16 %v890, %v890
      %v907 = vpack.c.b16 %v891, %v891
      %v908 = vpack.c.b16 %v892, %v892
      %v909 = vpack.c.b16 %v893, %v893
      %vm926 = vcmask 125952
      %927 = vst.msk [vmem:[%s385] sm:$0xf] %vm926, %v894
      %928 = vst.msk [vmem:[%s385 + $0x4] sm:$0xf] %vm926, %v895
      %929 = vst.msk [vmem:[%s385 + $0x8] sm:$0xf] %vm926, %v896
      %930 = vst.msk [vmem:[%s385 + $0xc] sm:$0xf] %vm926, %v897
      %931 = vst.msk [vmem:[%s385 + $0x10] sm:$0xf] %vm926, %v898
      %932 = vst.msk [vmem:[%s385 + $0x14] sm:$0xf] %vm926, %v899
      %933 = vst.msk [vmem:[%s385 + $0x18] sm:$0xf] %vm926, %v900
      %934 = vst.msk [vmem:[%s385 + $0x1c] sm:$0xf] %vm926, %v901
      %935 = vst.msk [vmem:[%s385 + $0x20] sm:$0xf] %vm926, %v902
      %936 = vst.msk [vmem:[%s385 + $0x24] sm:$0xf] %vm926, %v903
      %937 = vst.msk [vmem:[%s385 + $0x28] sm:$0xf] %vm926, %v904
      %938 = vst.msk [vmem:[%s385 + $0x2c] sm:$0xf] %vm926, %v905
      %939 = vst.msk [vmem:[%s385 + $0x30] sm:$0xf] %vm926, %v906
      %940 = vst.msk [vmem:[%s385 + $0x34] sm:$0xf] %vm926, %v907
      %941 = vst.msk [vmem:[%s385 + $0x38] sm:$0xf] %vm926, %v908
      %942 = vst.msk [vmem:[%s385 + $0x3c] sm:$0xf] %vm926, %v909
      %s943 = smul.u32 16, %s25
      %p944 = scmp.lt.s32.totalorder %s24, 1
      %s945 = scalar_select %p944, %s24, 1
      %p946 = scmp.lt.s32.totalorder %s943, 63
      %s947 = scalar_select %p946, %s943, 63
      %s948 = smul.addr %s945, 64
      %s949 = sadd.s32 %s947, %s948
      %s950 = smul.addr %s949, 4
      %s951 = scalar_lea.vmem %s7, %s950
      %s952 = smul.u32 16, %s25
      %p953 = scmp.lt.s32.totalorder %s24, 1
      %s954 = scalar_select %p953, %s24, 1
      %p955 = scmp.lt.s32.totalorder %s952, 63
      %s956 = scalar_select %p955, %s952, 63
      %s957 = smul.addr %s954, 64
      %s958 = sadd.s32 %s956, %s957
      %s959 = smul.addr %s958, 8
      %s960 = scalar_lea.vmem %s8, %s959
      // Predicated region
      $region49: #{learnable_edge_attention_forward.3} parent=47 // pred_check
        %p961 = pneg %p216
      $region50: #{learnable_edge_attention_forward.3} parent=47 // pred_check_branch
        %963 = sbr.rel (%p961) target = $region52
      $region51: #{learnable_edge_attention_forward.3} parent=47 // pred_region
        %s964 = smul.u32 16, %s25
      $region52: #{learnable_edge_attention_forward.3} parent=47 // pred_fallthru
        _
      // Predicated region
      $region53: #{learnable_edge_attention_forward.3} parent=47 // pred_check
        %p965 = pneg %p244
      $region54: #{learnable_edge_attention_forward.3} parent=47 // pred_check_branch
        %967 = sbr.rel (%p965) target = $region56
      $region55: #{learnable_edge_attention_forward.3} parent=47 // pred_region
        %s968 = smul.u32 16, %s25
      $region56: #{learnable_edge_attention_forward.3} parent=47 // pred_fallthru
        _
    $region48: #{learnable_edge_attention_forward.3} parent=5 // pred_fallthru
      _
    %p969 = scmp.le.s32.totalorder 2, %s15
    // Predicated region
    $region57: #{learnable_edge_attention_forward.3} parent=5 // pred_check
      %p970 = pneg %p969
    $region58: #{learnable_edge_attention_forward.3} parent=5 // pred_check_branch
      %972 = sbr.rel (%p970) target = $region60
    $region59: #{learnable_edge_attention_forward.3} parent=5 // pred_region
      %s973 = ssub.s32 %s15, 2
      // Predicated region
      $region61: #{learnable_edge_attention_forward.3} parent=59 // pred_check
        %p974 = pneg %p222
      $region62: #{learnable_edge_attention_forward.3} parent=59 // pred_check_branch
        %976 = sbr.rel (%p974) target = $region64
      $region63: #{learnable_edge_attention_forward.3} parent=59 // pred_region
        %s977 = smul.u32 16, %s27
        %p978 = scmp.lt.s32.totalorder %s26, 1
        %s979 = scalar_select %p978, %s26, 1
        %p980 = scmp.lt.s32.totalorder %s977, 63
        %s981 = scalar_select %p980, %s977, 63
        %s982 = smul.addr %s979, 64
        %s983 = sadd.s32 %s981, %s982
        %s984 = smul.addr %s983, 4
        %s985 = scalar_lea.vmem %s7, %s984
      $region64: #{learnable_edge_attention_forward.3} parent=59 // pred_fallthru
        _
      // Predicated region
      $region65: #{learnable_edge_attention_forward.3} parent=59 // pred_check
        %p986 = pneg %p250
      $region66: #{learnable_edge_attention_forward.3} parent=59 // pred_check_branch
        %988 = sbr.rel (%p986) target = $region68
      $region67: #{learnable_edge_attention_forward.3} parent=59 // pred_region
        %s989 = smul.u32 16, %s27
        %p990 = scmp.lt.s32.totalorder %s26, 1
        %s991 = scalar_select %p990, %s26, 1
        %p992 = scmp.lt.s32.totalorder %s989, 63
        %s993 = scalar_select %p992, %s989, 63
        %s994 = smul.addr %s991, 64
        %s995 = sadd.s32 %s993, %s994
        %s996 = smul.addr %s995, 8
        %s997 = scalar_lea.vmem %s8, %s996
      $region68: #{learnable_edge_attention_forward.3} parent=59 // pred_fallthru
        _
    $region60: #{learnable_edge_attention_forward.3} parent=5 // pred_fallthru
      _
  $region6: #{learnable_edge_attention_forward.3} parent=0 // loop_footer
    %s19 = sadd.s32 1, %s15
  $region7: #{learnable_edge_attention_forward.3} parent=0 // loop_footer_branch
    %14 = sbr.rel target = $region3
  $region8: #{learnable_edge_attention_forward.3} parent=0 // loop_exit
    _

// kernel: learnable_edge_attention_forward.4
$region0: #{learnable_edge_attention_forward.4}
  #allocation0 [shape = 'u32[]', space=smem, size = 0x4, offset = 0x4, fixed_abs, tag = 'smem constant byte address 0x4 - core index']
  #allocation1 [shape = 'u32[144,128]{1,0:T(1,128)}', space=vmem, size = 0x12000, scoped, tag = 'internal scratch']
  %s0 = inlined_call_operand.vmem [shape: f32[2,64,8], index: 0, kind: input, shape index: {}]
  %s1 = inlined_call_operand.vmem [shape: f32[2,64,8], index: 1, kind: input, shape index: {}]
  %s2 = inlined_call_operand.vmem [shape: f32[2,64,8], index: 2, kind: output, shape index: {}]
  %s3 = sld [smem:[#allocation0]]
  $region41: #{learnable_edge_attention_forward.4} parent=0
    _
  %s5 = ssub.s32 1, %s3
  %s6 = scalar_select 0, %s5, %s3
  loop: start=0, step=1, limit=10
  $region2: #{learnable_edge_attention_forward.4} parent=0 // loop_pre_header
    _
  $region3: #{learnable_edge_attention_forward.4} parent=0 // loop_header
    %s8 = sphi 0, %s12
    %p9 = scmp.ge.s32.totalorder %s8, 10
    %s15 = sphi 0, %s27
    %s16 = sphi 0, %s23
    %s17 = sphi 0, %s15
    %s18 = sphi 0, %s16
    %s19 = sphi 0, %s17
    %s20 = sphi 0, %s18
    %s32 = sphi 0, %s34
    %s35 = sphi 0, %s32
    %s36 = sphi 0, %s35
    %s52 = sphi 0, %s36
    %s60 = sphi 0, %s62
    %s63 = sphi 0, %s60
    %s64 = sphi 0, %s63
    %s80 = sphi 0, %s64
    %s88 = sphi 0, %s90
    %s91 = sphi 0, %s88
    %s92 = sphi 0, %s91
    %s108 = sphi 0, %s92
  $region4: #{learnable_edge_attention_forward.4} parent=0 // loop_header_branch
    %11 = sbr.rel (%p9) target = $region8
  $region5: #{learnable_edge_attention_forward.4} parent=0 // loop_body
    %s13 = ssub.s32 %s8, 1
    %s14 = ssub.s32 %s8, 2
    %s21 = sadd.s32 1, %s16
    %p22 = scmp.ge.s32.totalorder %s21, 4
    %s23 = scalar_select %p22, 0, %s21
    %s24 = sadd.s32 1, %s15
    %s25 = scalar_select %p22, %s24, %s15
    %p26 = scmp.ge.s32.totalorder %s25, 2
    %s27 = scalar_select %p26, 0, %s25
    %s28 = ssub.s32 %s15, %s27
    %s29 = ssub.s32 %s16, %s23
    %s30 = sor.u32 %s28, %s29
    %p31 = scmp.eq.s32.totalorder %s30, 0
    %s33 = sadd.s32 %s32, 1
    %s34 = scalar_select %p31, %s32, %s33
    %p37 = pneg %p31
    %p38 = scmp.eq.s32.totalorder %s8, 7
    %p39 = por %p37, %p38
    %p40 = scmp.ne.s32.totalorder %s32, %s35
    %p41 = scmp.eq.s32.totalorder %s8, 0
    %p42 = por %p40, %p41
    %p43 = scmp.ne.s32.totalorder %s32, %s35
    %p44 = scmp.eq.s32.totalorder %s13, 7
    %p45 = por %p43, %p44
    %p46 = scmp.ne.s32.totalorder %s35, %s36
    %p47 = scmp.eq.s32.totalorder %s13, 0
    %p48 = por %p46, %p47
    %p49 = scmp.ne.s32.totalorder %s35, %s36
    %p50 = scmp.eq.s32.totalorder %s14, 7
    %p51 = por %p49, %p50
    %p53 = scmp.ne.s32.totalorder %s36, %s52
    %p54 = scmp.eq.s32.totalorder %s14, 0
    %p55 = por %p53, %p54
    %s56 = ssub.s32 %s15, %s27
    %s57 = ssub.s32 %s16, %s23
    %s58 = sor.u32 %s56, %s57
    %p59 = scmp.eq.s32.totalorder %s58, 0
    %s61 = sadd.s32 %s60, 1
    %s62 = scalar_select %p59, %s60, %s61
    %p65 = pneg %p59
    %p66 = scmp.eq.s32.totalorder %s8, 7
    %p67 = por %p65, %p66
    %p68 = scmp.ne.s32.totalorder %s60, %s63
    %p69 = scmp.eq.s32.totalorder %s8, 0
    %p70 = por %p68, %p69
    %p71 = scmp.ne.s32.totalorder %s60, %s63
    %p72 = scmp.eq.s32.totalorder %s13, 7
    %p73 = por %p71, %p72
    %p74 = scmp.ne.s32.totalorder %s63, %s64
    %p75 = scmp.eq.s32.totalorder %s13, 0
    %p76 = por %p74, %p75
    %p77 = scmp.ne.s32.totalorder %s63, %s64
    %p78 = scmp.eq.s32.totalorder %s14, 7
    %p79 = por %p77, %p78
    %p81 = scmp.ne.s32.totalorder %s64, %s80
    %p82 = scmp.eq.s32.totalorder %s14, 0
    %p83 = por %p81, %p82
    %s84 = ssub.s32 %s15, %s27
    %s85 = ssub.s32 %s16, %s23
    %s86 = sor.u32 %s84, %s85
    %p87 = scmp.eq.s32.totalorder %s86, 0
    %s89 = sadd.s32 %s88, 1
    %s90 = scalar_select %p87, %s88, %s89
    %p93 = pneg %p87
    %p94 = scmp.eq.s32.totalorder %s8, 7
    %p95 = por %p93, %p94
    %p96 = scmp.ne.s32.totalorder %s88, %s91
    %p97 = scmp.eq.s32.totalorder %s8, 0
    %p98 = por %p96, %p97
    %p99 = scmp.ne.s32.totalorder %s88, %s91
    %p100 = scmp.eq.s32.totalorder %s13, 7
    %p101 = por %p99, %p100
    %p102 = scmp.ne.s32.totalorder %s91, %s92
    %p103 = scmp.eq.s32.totalorder %s13, 0
    %p104 = por %p102, %p103
    %p105 = scmp.ne.s32.totalorder %s91, %s92
    %p106 = scmp.eq.s32.totalorder %s14, 7
    %p107 = por %p105, %p106
    %p109 = scmp.ne.s32.totalorder %s92, %s108
    %p110 = scmp.eq.s32.totalorder %s14, 0
    %p111 = por %p109, %p110
    %p112 = scmp.le.s32.totalorder 1, %s8
    %p113 = scmp.lt.s32.totalorder %s8, 9
    %p114 = pnand %p112, %p113
    %p115 = pneg %p114
    // Predicated region
    $region9: #{learnable_edge_attention_forward.4} parent=5 // pred_check
      _
    $region10: #{learnable_edge_attention_forward.4} parent=5 // pred_check_branch
      %117 = sbr.rel (%p114) target = $region12
    $region11: #{learnable_edge_attention_forward.4} parent=5 // pred_region
      %s118 = ssub.s32 %s8, 1
    $region12: #{learnable_edge_attention_forward.4} parent=5 // pred_fallthru
      _
    %p119 = scmp.lt.s32.totalorder %s8, 8
    // Predicated region
    $region13: #{learnable_edge_attention_forward.4} parent=5 // pred_check
      %p120 = pneg %p119
    $region14: #{learnable_edge_attention_forward.4} parent=5 // pred_check_branch
      %122 = sbr.rel (%p120) target = $region16
    $region15: #{learnable_edge_attention_forward.4} parent=5 // pred_region
      // Predicated region
      $region17: #{learnable_edge_attention_forward.4} parent=15 // pred_check
        %p123 = pneg %p42
      $region18: #{learnable_edge_attention_forward.4} parent=15 // pred_check_branch
        %125 = sbr.rel (%p123) target = $region20
      $region19: #{learnable_edge_attention_forward.4} parent=15 // pred_region
        %s126 = smul.u32 2, %s16
        %p127 = scmp.lt.s32.totalorder %s15, 1
        %s128 = scalar_select %p127, %s15, 1
        %p129 = scmp.lt.s32.totalorder %s126, 7
        %s130 = scalar_select %p129, %s126, 7
        %s131 = smul.addr %s128, 8
        %s132 = sadd.s32 %s130, %s131
        %s133 = smul.addr %s132, 8
        %s134 = scalar_lea.vmem %s0, %s133
        %s135 = smul.u32 2, %s16
      $region20: #{learnable_edge_attention_forward.4} parent=15 // pred_fallthru
        _
      // Predicated region
      $region21: #{learnable_edge_attention_forward.4} parent=15 // pred_check
        %p136 = pneg %p70
      $region22: #{learnable_edge_attention_forward.4} parent=15 // pred_check_branch
        %138 = sbr.rel (%p136) target = $region24
      $region23: #{learnable_edge_attention_forward.4} parent=15 // pred_region
        %s139 = smul.u32 2, %s16
        %p140 = scmp.lt.s32.totalorder %s15, 1
        %s141 = scalar_select %p140, %s15, 1
        %p142 = scmp.lt.s32.totalorder %s139, 7
        %s143 = scalar_select %p142, %s139, 7
        %s144 = smul.addr %s141, 8
        %s145 = sadd.s32 %s143, %s144
        %s146 = smul.addr %s145, 8
        %s147 = scalar_lea.vmem %s1, %s146
        %s148 = smul.u32 2, %s16
      $region24: #{learnable_edge_attention_forward.4} parent=15 // pred_fallthru
        _
    $region16: #{learnable_edge_attention_forward.4} parent=5 // pred_fallthru
      _
    %p149 = scmp.le.s32.totalorder 1, %s8
    %p150 = scmp.lt.s32.totalorder %s8, 9
    %p151 = pnand %p149, %p150
    %p152 = pneg %p151
    // Predicated region
    $region25: #{learnable_edge_attention_forward.4} parent=5 // pred_check
      _
    $region26: #{learnable_edge_attention_forward.4} parent=5 // pred_check_branch
      %154 = sbr.rel (%p151) target = $region28
    $region27: #{learnable_edge_attention_forward.4} parent=5 // pred_region
      %s155 = ssub.s32 %s8, 1
      %s156 = smul.u32 2, %s18
      %p157 = scmp.lt.s32.totalorder %s17, 1
      %s158 = scalar_select %p157, %s17, 1
      %p159 = scmp.lt.s32.totalorder %s156, 7
      %s160 = scalar_select %p159, %s156, 7
      %s161 = smul.addr %s158, 8
      %s162 = sadd.s32 %s160, %s161
      %s163 = smul.addr %s162, 8
      %s164 = scalar_lea.vmem %s0, %s163
      %p165 = pneg %p48
      %p166 = pneg %p45
      %s167 = smul.u32 2, %s18
      %p168 = scmp.lt.s32.totalorder %s17, 1
      %s169 = scalar_select %p168, %s17, 1
      %p170 = scmp.lt.s32.totalorder %s167, 7
      %s171 = scalar_select %p170, %s167, 7
      %s172 = smul.addr %s169, 8
      %s173 = sadd.s32 %s171, %s172
      %s174 = smul.addr %s173, 8
      %s175 = scalar_lea.vmem %s1, %s174
      %p176 = pneg %p76
      %p177 = pneg %p73
      %p178 = pneg %p104
      %p179 = pneg %p101
      %s180 = smul.u32 2, %s18
      %p181 = scmp.lt.s32.totalorder %s17, 1
      %s182 = scalar_select %p181, %s17, 1
      %p183 = scmp.lt.s32.totalorder %s180, 7
      %s184 = scalar_select %p183, %s180, 7
      %s185 = smul.addr %s182, 8
      %s186 = sadd.s32 %s184, %s185
      %s187 = smul.addr %s186, 8
      %s188 = scalar_lea.vmem %s2, %s187
      %s189 = smul.u32 2, %s18
      %p190 = scmp.lt.s32.totalorder %s17, 1
      %s191 = scalar_select %p190, %s17, 1
      %p192 = scmp.lt.s32.totalorder %s189, 7
      %s193 = scalar_select %p192, %s189, 7
      %s194 = smul.addr %s191, 8
      %s195 = sadd.s32 %s193, %s194
      %s196 = smul.addr %s195, 8
      %s197 = scalar_lea.vmem %s0, %s196
      %s198 = smul.u32 2, %s18
      %s199 = smul.u32 2, %s18
      %p200 = scmp.lt.s32.totalorder %s17, 1
      %s201 = scalar_select %p200, %s17, 1
      %p202 = scmp.lt.s32.totalorder %s199, 7
      %s203 = scalar_select %p202, %s199, 7
      %s204 = smul.addr %s201, 8
      %s205 = sadd.s32 %s203, %s204
      %s206 = smul.addr %s205, 8
      %s207 = scalar_lea.vmem %s1, %s206
      %s208 = smul.u32 2, %s18
      %s209 = smul.u32 2, %s18
      %p210 = scmp.lt.s32.totalorder %s17, 1
      %s211 = scalar_select %p210, %s17, 1
      %p212 = scmp.lt.s32.totalorder %s209, 7
      %s213 = scalar_select %p212, %s209, 7
      %s214 = smul.addr %s211, 8
      %s215 = sadd.s32 %s213, %s214
      %s216 = smul.addr %s215, 8
      %s217 = scalar_lea.vmem %s2, %s216
      %s218 = smul.u32 2, %s18
      %v219 = vld [vmem:[%s207] sm:$0xff]
      %v220 = vld [vmem:[%s207 + $0x8] sm:$0xff]
      %v221 = vsub.f32 0.0, %v219
      %v222 = vsub.f32 0.0, %v220
      %v223 = vmul.f32 %v221, 1.442695
      %v224 = vpow.pop %v223
      %v225 = vmul.f32 %v222, 1.442695
      %v226 = vpow.pop %v225
      %v227 = vadd.f32 %v224, 1.0
      %v228 = vadd.f32 %v226, 1.0
      %v229 = vrcp.pop %v227
      %v230 = vrcp.pop %v228
      %v231 = vld [vmem:[%s197] sm:$0xff]
      %v232 = vld [vmem:[%s197 + $0x8] sm:$0xff]
      %v233 = vmul.f32 %v231, %v229
      %v234 = vmul.f32 %v232, %v230
      %v235 = vmul.f32 %v233, %v229
      %v236 = vmul.f32 %v234, %v230
      %vm237 = vcmask 64512
      %v238 = vsel %vm237, %v235, -inf
      %239 = vmax.xlane.f32.xlu0 %v238
      %v240 = vpop.xlane.xlu0 %239
      %v241 = vsel %vm237, %v236, -inf
      %242 = vmax.xlane.f32.xlu0 %v241
      %v243 = vpop.xlane.xlu0 %242
      %v244 = vsub.f32 %v235, %v240
      %v245 = vsub.f32 %v236, %v243
      %v246 = vmul.f32 %v244, 1.442695
      %v247 = vpow.pop %v246
      %v248 = vmul.f32 %v245, 1.442695
      %v249 = vpow.pop %v248
      %v250 = vsel %vm237, %v247, 0.0
      %251 = vadd.xlane.f32.xlu0 %v250
      %v252 = vpop.xlane.xlu0 %251
      %v253 = vsel %vm237, %v249, 0.0
      %254 = vadd.xlane.f32.xlu0 %v253
      %v255 = vpop.xlane.xlu0 %254
      %v256 = vrcp.pop %v252
      %v257 = vrcp.pop %v255
      %v258 = vmul.f32 %v247, %v256
      %v259 = vmul.f32 %v249, %v257
      %v260 = vmul.f32 %v258, %v229
      %v261 = vmul.f32 %v259, %v230
      %262 = vst.msk [vmem:[%s217] sm:$0xff] %vm237, %v260
      %263 = vst.msk [vmem:[%s217 + $0x8] sm:$0xff] %vm237, %v261
      %s264 = smul.u32 2, %s18
      %p265 = scmp.lt.s32.totalorder %s17, 1
      %s266 = scalar_select %p265, %s17, 1
      %p267 = scmp.lt.s32.totalorder %s264, 7
      %s268 = scalar_select %p267, %s264, 7
      %s269 = smul.addr %s266, 8
      %s270 = sadd.s32 %s268, %s269
      %s271 = smul.addr %s270, 8
      %s272 = scalar_lea.vmem %s2, %s271
      // Predicated region
      $region29: #{learnable_edge_attention_forward.4} parent=27 // pred_check
        %p273 = pneg %p101
      $region30: #{learnable_edge_attention_forward.4} parent=27 // pred_check_branch
        %275 = sbr.rel (%p273) target = $region32
      $region31: #{learnable_edge_attention_forward.4} parent=27 // pred_region
        %s276 = smul.u32 2, %s18
      $region32: #{learnable_edge_attention_forward.4} parent=27 // pred_fallthru
        _
    $region28: #{learnable_edge_attention_forward.4} parent=5 // pred_fallthru
      _
    %p277 = scmp.le.s32.totalorder 2, %s8
    // Predicated region
    $region33: #{learnable_edge_attention_forward.4} parent=5 // pred_check
      %p278 = pneg %p277
    $region34: #{learnable_edge_attention_forward.4} parent=5 // pred_check_branch
      %280 = sbr.rel (%p278) target = $region36
    $region35: #{learnable_edge_attention_forward.4} parent=5 // pred_region
      %s281 = ssub.s32 %s8, 2
      // Predicated region
      $region37: #{learnable_edge_attention_forward.4} parent=35 // pred_check
        %p282 = pneg %p107
      $region38: #{learnable_edge_attention_forward.4} parent=35 // pred_check_branch
        %284 = sbr.rel (%p282) target = $region40
      $region39: #{learnable_edge_attention_forward.4} parent=35 // pred_region
        %s285 = smul.u32 2, %s20
        %p286 = scmp.lt.s32.totalorder %s19, 1
        %s287 = scalar_select %p286, %s19, 1
        %p288 = scmp.lt.s32.totalorder %s285, 7
        %s289 = scalar_select %p288, %s285, 7
        %s290 = smul.addr %s287, 8
        %s291 = sadd.s32 %s289, %s290
        %s292 = smul.addr %s291, 8
        %s293 = scalar_lea.vmem %s2, %s292
      $region40: #{learnable_edge_attention_forward.4} parent=35 // pred_fallthru
        _
    $region36: #{learnable_edge_attention_forward.4} parent=5 // pred_fallthru
      _
  $region6: #{learnable_edge_attention_forward.4} parent=0 // loop_footer
    %s12 = sadd.s32 1, %s8
  $region7: #{learnable_edge_attention_forward.4} parent=0 // loop_footer_branch
    %7 = sbr.rel target = $region3
  $region8: #{learnable_edge_attention_forward.4} parent=0 // loop_exit
    _

// kernel: learnable_edge_attention_forward.5
$region0: #{learnable_edge_attention_forward.5}
  #allocation0 [shape = 'u32[]', space=smem, size = 0x4, offset = 0x4, fixed_abs, tag = 'smem constant byte address 0x4 - core index']
  #allocation1 [shape = 'u32[144,128]{1,0:T(1,128)}', space=vmem, size = 0x12000, scoped, tag = 'internal scratch']
  %s0 = inlined_call_operand.vmem [shape: bf16[2,512,16], index: 0, kind: input, shape index: {}]
  %s1 = inlined_call_operand.vmem [shape: f32[2,512,1], index: 1, kind: input, shape index: {}]
  %s2 = inlined_call_operand.vmem [shape: bf16[16,16], index: 2, kind: input, shape index: {}]
  %s3 = inlined_call_operand.vmem [shape: f32[1,16], index: 3, kind: input, shape index: {}]
  %s4 = inlined_call_operand.vmem [shape: f32[1,16], index: 4, kind: input, shape index: {}]
  %s5 = inlined_call_operand.hbm [shape: f32[2,512,16], index: 5, kind: output, shape index: {}]
  %s6 = sld [smem:[#allocation0]]
  $region53: #{learnable_edge_attention_forward.5} parent=0
    _
  %s8 = ssub.s32 1, %s6
  %s9 = scalar_select 0, %s8, %s6
  $region1: #{learnable_edge_attention_forward.5} parent=0
    #allocation2 [shape = 'u8[131072]{0}', space=vmem, size = 0x20000, scoped, tag = 'output window, operand 0']
    #allocation3 [shape = 's32[2]{0}', space=sflag, size = 0x8, scoped, tag = 'scoped memory for learnable_edge_attention_forward.5']
    %10 = vsyncpa [#allocation3], 0
    %s11 = scalar_lea.sflag [#allocation3], 1
    %12 = vsyncpa %s11, 0
    loop: start=0, step=1, limit=10
    $region2: #{learnable_edge_attention_forward.5} parent=1 // loop_pre_header
      _
    $region3: #{learnable_edge_attention_forward.5} parent=1 // loop_header
      %s14 = sphi 0, %s18
      %p15 = scmp.ge.s32.totalorder %s14, 10
      %s21 = sphi 0, %s33
      %s22 = sphi 0, %s29
      %s23 = sphi 0, %s21
      %s24 = sphi 0, %s22
      %s25 = sphi 0, %s23
      %s26 = sphi 0, %s24
      %s38 = sphi 0, %s40
      %s41 = sphi 0, %s38
      %s42 = sphi 0, %s41
      %s58 = sphi 0, %s42
      %s66 = sphi 0, %s68
      %s69 = sphi 0, %s66
      %s70 = sphi 0, %s69
      %s86 = sphi 0, %s70
      %s90 = sphi 0, %s90
      %s92 = sphi 0, %s90
      %s93 = sphi 0, %s92
      %s107 = sphi 0, %s93
      %s111 = sphi 0, %s111
      %s113 = sphi 0, %s111
      %s114 = sphi 0, %s113
      %s128 = sphi 0, %s114
      %s132 = sphi 0, %s132
      %s134 = sphi 0, %s132
      %s135 = sphi 0, %s134
      %s149 = sphi 0, %s135
      %s157 = sphi 0, %s159
      %s160 = sphi 0, %s157
      %s161 = sphi 0, %s160
      %s177 = sphi 0, %s161
    $region4: #{learnable_edge_attention_forward.5} parent=1 // loop_header_branch
      %17 = sbr.rel (%p15) target = $region8
    $region5: #{learnable_edge_attention_forward.5} parent=1 // loop_body
      %s19 = ssub.s32 %s14, 1
      %s20 = ssub.s32 %s14, 2
      %s27 = sadd.s32 1, %s22
      %p28 = scmp.ge.s32.totalorder %s27, 4
      %s29 = scalar_select %p28, 0, %s27
      %s30 = sadd.s32 1, %s21
      %s31 = scalar_select %p28, %s30, %s21
      %p32 = scmp.ge.s32.totalorder %s31, 2
      %s33 = scalar_select %p32, 0, %s31
      %s34 = ssub.s32 %s21, %s33
      %s35 = ssub.s32 %s22, %s29
      %s36 = sor.u32 %s34, %s35
      %p37 = scmp.eq.s32.totalorder %s36, 0
      %s39 = sadd.s32 %s38, 1
      %s40 = scalar_select %p37, %s38, %s39
      %p43 = pneg %p37
      %p44 = scmp.eq.s32.totalorder %s14, 7
      %p45 = por %p43, %p44
      %p46 = scmp.ne.s32.totalorder %s38, %s41
      %p47 = scmp.eq.s32.totalorder %s14, 0
      %p48 = por %p46, %p47
      %p49 = scmp.ne.s32.totalorder %s38, %s41
      %p50 = scmp.eq.s32.totalorder %s19, 7
      %p51 = por %p49, %p50
      %p52 = scmp.ne.s32.totalorder %s41, %s42
      %p53 = scmp.eq.s32.totalorder %s19, 0
      %p54 = por %p52, %p53
      %p55 = scmp.ne.s32.totalorder %s41, %s42
      %p56 = scmp.eq.s32.totalorder %s20, 7
      %p57 = por %p55, %p56
      %p59 = scmp.ne.s32.totalorder %s42, %s58
      %p60 = scmp.eq.s32.totalorder %s20, 0
      %p61 = por %p59, %p60
      %s62 = ssub.s32 %s21, %s33
      %s63 = ssub.s32 %s22, %s29
      %s64 = sor.u32 %s62, %s63
      %p65 = scmp.eq.s32.totalorder %s64, 0
      %s67 = sadd.s32 %s66, 1
      %s68 = scalar_select %p65, %s66, %s67
      %p71 = pneg %p65
      %p72 = scmp.eq.s32.totalorder %s14, 7
      %p73 = por %p71, %p72
      %p74 = scmp.ne.s32.totalorder %s66, %s69
      %p75 = scmp.eq.s32.totalorder %s14, 0
      %p76 = por %p74, %p75
      %p77 = scmp.ne.s32.totalorder %s66, %s69
      %p78 = scmp.eq.s32.totalorder %s19, 7
      %p79 = por %p77, %p78
      %p80 = scmp.ne.s32.totalorder %s69, %s70
      %p81 = scmp.eq.s32.totalorder %s19, 0
      %p82 = por %p80, %p81
      %p83 = scmp.ne.s32.totalorder %s69, %s70
      %p84 = scmp.eq.s32.totalorder %s20, 7
      %p85 = por %p83, %p84
      %p87 = scmp.ne.s32.totalorder %s70, %s86
      %p88 = scmp.eq.s32.totalorder %s20, 0
      %p89 = por %p87, %p88
      %s91 = sadd.s32 %s90, 1
      %p94 = scmp.eq.s32.totalorder %s14, 7
      %p95 = scmp.ne.s32.totalorder %s90, %s92
      %p96 = scmp.eq.s32.totalorder %s14, 0
      %p97 = por %p95, %p96
      %p98 = scmp.ne.s32.totalorder %s90, %s92
      %p99 = scmp.eq.s32.totalorder %s19, 7
      %p100 = por %p98, %p99
      %p101 = scmp.ne.s32.totalorder %s92, %s93
      %p102 = scmp.eq.s32.totalorder %s19, 0
      %p103 = por %p101, %p102
      %p104 = scmp.ne.s32.totalorder %s92, %s93
      %p105 = scmp.eq.s32.totalorder %s20, 7
      %p106 = por %p104, %p105
      %p108 = scmp.ne.s32.totalorder %s93, %s107
      %p109 = scmp.eq.s32.totalorder %s20, 0
      %p110 = por %p108, %p109
      %s112 = sadd.s32 %s111, 1
      %p115 = scmp.eq.s32.totalorder %s14, 7
      %p116 = scmp.ne.s32.totalorder %s111, %s113
      %p117 = scmp.eq.s32.totalorder %s14, 0
      %p118 = por %p116, %p117
      %p119 = scmp.ne.s32.totalorder %s111, %s113
      %p120 = scmp.eq.s32.totalorder %s19, 7
      %p121 = por %p119, %p120
      %p122 = scmp.ne.s32.totalorder %s113, %s114
      %p123 = scmp.eq.s32.totalorder %s19, 0
      %p124 = por %p122, %p123
      %p125 = scmp.ne.s32.totalorder %s113, %s114
      %p126 = scmp.eq.s32.totalorder %s20, 7
      %p127 = por %p125, %p126
      %p129 = scmp.ne.s32.totalorder %s114, %s128
      %p130 = scmp.eq.s32.totalorder %s20, 0
      %p131 = por %p129, %p130
      %s133 = sadd.s32 %s132, 1
      %p136 = scmp.eq.s32.totalorder %s14, 7
      %p137 = scmp.ne.s32.totalorder %s132, %s134
      %p138 = scmp.eq.s32.totalorder %s14, 0
      %p139 = por %p137, %p138
      %p140 = scmp.ne.s32.totalorder %s132, %s134
      %p141 = scmp.eq.s32.totalorder %s19, 7
      %p142 = por %p140, %p141
      %p143 = scmp.ne.s32.totalorder %s134, %s135
      %p144 = scmp.eq.s32.totalorder %s19, 0
      %p145 = por %p143, %p144
      %p146 = scmp.ne.s32.totalorder %s134, %s135
      %p147 = scmp.eq.s32.totalorder %s20, 7
      %p148 = por %p146, %p147
      %p150 = scmp.ne.s32.totalorder %s135, %s149
      %p151 = scmp.eq.s32.totalorder %s20, 0
      %p152 = por %p150, %p151
      %s153 = ssub.s32 %s21, %s33
      %s154 = ssub.s32 %s22, %s29
      %s155 = sor.u32 %s153, %s154
      %p156 = scmp.eq.s32.totalorder %s155, 0
      %s158 = sadd.s32 %s157, 1
      %s159 = scalar_select %p156, %s157, %s158
      %p162 = pneg %p156
      %p163 = scmp.eq.s32.totalorder %s14, 7
      %p164 = por %p162, %p163
      %p165 = scmp.ne.s32.totalorder %s157, %s160
      %p166 = scmp.eq.s32.totalorder %s14, 0
      %p167 = por %p165, %p166
      %p168 = scmp.ne.s32.totalorder %s157, %s160
      %p169 = scmp.eq.s32.totalorder %s19, 7
      %p170 = por %p168, %p169
      %p171 = scmp.ne.s32.totalorder %s160, %s161
      %p172 = scmp.eq.s32.totalorder %s19, 0
      %p173 = por %p171, %p172
      %p174 = scmp.ne.s32.totalorder %s160, %s161
      %p175 = scmp.eq.s32.totalorder %s20, 7
      %p176 = por %p174, %p175
      %p178 = scmp.ne.s32.totalorder %s161, %s177
      %p179 = scmp.eq.s32.totalorder %s20, 0
      %p180 = por %p178, %p179
      %p181 = scmp.le.s32.totalorder 1, %s14
      %p182 = scmp.lt.s32.totalorder %s14, 9
      %p183 = pnand %p181, %p182
      %p184 = pneg %p183
      // Predicated region
      $region9: #{learnable_edge_attention_forward.5} parent=5 // pred_check
        _
      $region10: #{learnable_edge_attention_forward.5} parent=5 // pred_check_branch
        %186 = sbr.rel (%p183) target = $region12
      $region11: #{learnable_edge_attention_forward.5} parent=5 // pred_region
        %s187 = ssub.s32 %s14, 1
        // Predicated region
        $region13: #{learnable_edge_attention_forward.5} parent=11 // pred_check
          %p188 = pneg %p103
        $region14: #{learnable_edge_attention_forward.5} parent=11 // pred_check_branch
          %190 = sbr.rel (%p188) target = $region16
        $region15: #{learnable_edge_attention_forward.5} parent=11 // pred_region
          _
        $region16: #{learnable_edge_attention_forward.5} parent=11 // pred_fallthru
          _
        // Predicated region
        $region17: #{learnable_edge_attention_forward.5} parent=11 // pred_check
          %p191 = pneg %p124
        $region18: #{learnable_edge_attention_forward.5} parent=11 // pred_check_branch
          %193 = sbr.rel (%p191) target = $region20
        $region19: #{learnable_edge_attention_forward.5} parent=11 // pred_region
          _
        $region20: #{learnable_edge_attention_forward.5} parent=11 // pred_fallthru
          _
        // Predicated region
        $region21: #{learnable_edge_attention_forward.5} parent=11 // pred_check
          %p194 = pneg %p145
        $region22: #{learnable_edge_attention_forward.5} parent=11 // pred_check_branch
          %196 = sbr.rel (%p194) target = $region24
        $region23: #{learnable_edge_attention_forward.5} parent=11 // pred_region
          _
        $region24: #{learnable_edge_attention_forward.5} parent=11 // pred_fallthru
          _
      $region12: #{learnable_edge_attention_forward.5} parent=5 // pred_fallthru
        _
      %p197 = scmp.lt.s32.totalorder %s14, 8
      // Predicated region
      $region25: #{learnable_edge_attention_forward.5} parent=5 // pred_check
        %p198 = pneg %p197
      $region26: #{learnable_edge_attention_forward.5} parent=5 // pred_check_branch
        %200 = sbr.rel (%p198) target = $region28
      $region27: #{learnable_edge_attention_forward.5} parent=5 // pred_region
        // Predicated region
        $region29: #{learnable_edge_attention_forward.5} parent=27 // pred_check
          %p201 = pneg %p48
        $region30: #{learnable_edge_attention_forward.5} parent=27 // pred_check_branch
          %203 = sbr.rel (%p201) target = $region32
        $region31: #{learnable_edge_attention_forward.5} parent=27 // pred_region
          %s204 = smul.u32 16, %s22
          %p205 = scmp.lt.s32.totalorder %s21, 1
          %s206 = scalar_select %p205, %s21, 1
          %p207 = scmp.lt.s32.totalorder %s204, 63
          %s208 = scalar_select %p207, %s204, 63
          %s209 = smul.addr %s206, 64
          %s210 = sadd.s32 %s208, %s209
          %s211 = smul.addr %s210, 4
          %s212 = scalar_lea.vmem %s0, %s211
          %s213 = smul.u32 16, %s22
        $region32: #{learnable_edge_attention_forward.5} parent=27 // pred_fallthru
          _
        // Predicated region
        $region33: #{learnable_edge_attention_forward.5} parent=27 // pred_check
          %p214 = pneg %p76
        $region34: #{learnable_edge_attention_forward.5} parent=27 // pred_check_branch
          %216 = sbr.rel (%p214) target = $region36
        $region35: #{learnable_edge_attention_forward.5} parent=27 // pred_region
          %s217 = smul.u32 16, %s22
          %p218 = scmp.lt.s32.totalorder %s21, 1
          %s219 = scalar_select %p218, %s21, 1
          %p220 = scmp.lt.s32.totalorder %s217, 63
          %s221 = scalar_select %p220, %s217, 63
          %s222 = smul.addr %s219, 64
          %s223 = sadd.s32 %s221, %s222
          %s224 = smul.addr %s223, 8
          %s225 = scalar_lea.vmem %s1, %s224
          %s226 = smul.u32 16, %s22
        $region36: #{learnable_edge_attention_forward.5} parent=27 // pred_fallthru
          _
      $region28: #{learnable_edge_attention_forward.5} parent=5 // pred_fallthru
        _
      %p227 = scmp.le.s32.totalorder 1, %s14
      %p228 = scmp.lt.s32.totalorder %s14, 9
      %p229 = pnand %p227, %p228
      %p230 = pneg %p229
      // Predicated region
      $region37: #{learnable_edge_attention_forward.5} parent=5 // pred_check
        _
      $region38: #{learnable_edge_attention_forward.5} parent=5 // pred_check_branch
        %232 = sbr.rel (%p229) target = $region40
      $region39: #{learnable_edge_attention_forward.5} parent=5 // pred_region
        %s233 = ssub.s32 %s14, 1
        %s234 = smul.u32 16, %s24
        %p235 = scmp.lt.s32.totalorder %s23, 1
        %s236 = scalar_select %p235, %s23, 1
        %p237 = scmp.lt.s32.totalorder %s234, 63
        %s238 = scalar_select %p237, %s234, 63
        %s239 = smul.addr %s236, 64
        %s240 = sadd.s32 %s238, %s239
        %s241 = smul.addr %s240, 4
        %s242 = scalar_lea.vmem %s0, %s241
        %p243 = pneg %p54
        %p244 = pneg %p51
        %s245 = smul.u32 16, %s24
        %p246 = scmp.lt.s32.totalorder %s23, 1
        %s247 = scalar_select %p246, %s23, 1
        %p248 = scmp.lt.s32.totalorder %s245, 63
        %s249 = scalar_select %p248, %s245, 63
        %s250 = smul.addr %s247, 64
        %s251 = sadd.s32 %s249, %s250
        %s252 = smul.addr %s251, 8
        %s253 = scalar_lea.vmem %s1, %s252
        %p254 = pneg %p82
        %p255 = pneg %p79
        %p256 = pneg %p103
        %p257 = pneg %p100
        %p258 = pneg %p124
        %p259 = pneg %p121
        %p260 = pneg %p145
        %p261 = pneg %p142
        %p262 = pneg %p173
        %p263 = pneg %p170
        %s264 = sand.u32 %s160, 1
        %s265 = scalar_lea.sflag [#allocation3], %s264
        %s266 = sand.u32 %s160, 1
        %s267 = smul.addr %s266, 128
        %s268 = scalar_lea.vmem [#allocation2], %s267
        %s269 = smul.u32 16, %s24
        %p270 = scmp.lt.s32.totalorder %s23, 1
        %s271 = scalar_select %p270, %s23, 1
        %p272 = scmp.lt.s32.totalorder %s269, 63
        %s273 = scalar_select %p272, %s269, 63
        %s274 = smul.addr %s271, 64
        %s275 = sadd.s32 %s273, %s274
        %s276 = smul.addr %s275, 4
        %s277 = scalar_lea.vmem %s0, %s276
        %s278 = smul.u32 16, %s24
        %s279 = smul.u32 16, %s24
        %p280 = scmp.lt.s32.totalorder %s23, 1
        %s281 = scalar_select %p280, %s23, 1
        %p282 = scmp.lt.s32.totalorder %s279, 63
        %s283 = scalar_select %p282, %s279, 63
        %s284 = smul.addr %s281, 64
        %s285 = sadd.s32 %s283, %s284
        %s286 = smul.addr %s285, 8
        %s287 = scalar_lea.vmem %s1, %s286
        %s288 = smul.u32 16, %s24
        %s289 = smul.u32 16, %s24
        %v291 = vld [vmem:[%s277] sm:$0xf]
        %v292 = vld [vmem:[%s277 + $0x4] sm:$0xf]
        %v293 = vld [vmem:[%s277 + $0x8] sm:$0xf]
        %v294 = vld [vmem:[%s277 + $0xc] sm:$0xf]
        %v295 = vld [vmem:[%s277 + $0x10] sm:$0xf]
        %v296 = vld [vmem:[%s277 + $0x14] sm:$0xf]
        %v297 = vld [vmem:[%s277 + $0x18] sm:$0xf]
        %v298 = vld [vmem:[%s277 + $0x1c] sm:$0xf]
        %v299 = vld [vmem:[%s277 + $0x20] sm:$0xf]
        %v300 = vld [vmem:[%s277 + $0x24] sm:$0xf]
        %v301 = vld [vmem:[%s277 + $0x28] sm:$0xf]
        %v302 = vld [vmem:[%s277 + $0x2c] sm:$0xf]
        %v303 = vld [vmem:[%s277 + $0x30] sm:$0xf]
        %v304 = vld [vmem:[%s277 + $0x34] sm:$0xf]
        %v305 = vld [vmem:[%s277 + $0x38] sm:$0xf]
        %v306 = vld [vmem:[%s277 + $0x3c] sm:$0xf]
        %v307 = vld [vmem:[%s2] sm:$0xf]
        %v308 = vld [vmem:[%s2 + $0x4] sm:$0xf]
        %v309 = vld [vmem:[%s3] sm:$0x1]
        %v311 = vlaneseq
        %v312 = vshrl.u32 %v311, 7
        %v313 = vsub.s32 0, %v312
        %v314 = vrot.slane %v309, %v313
        %v332 = vunpack.c.l.b16 %v291
        %v333 = vunpack.c.l.b16 %v292
        %v334 = vunpack.c.l.b16 %v293
        %v335 = vunpack.c.l.b16 %v294
        %v336 = vunpack.c.l.b16 %v295
        %v337 = vunpack.c.l.b16 %v296
        %v338 = vunpack.c.l.b16 %v297
        %v339 = vunpack.c.l.b16 %v298
        %v340 = vunpack.c.l.b16 %v299
        %v341 = vunpack.c.l.b16 %v300
        %v342 = vunpack.c.l.b16 %v301
        %v343 = vunpack.c.l.b16 %v302
        %v344 = vunpack.c.l.b16 %v303
        %v345 = vunpack.c.l.b16 %v304
        %v346 = vunpack.c.l.b16 %v305
        %v347 = vunpack.c.l.b16 %v306
        %v348 = vpack.c.b16 %v333, %v332
        %v349 = vpack.c.b16 %v335, %v334
        %v350 = vpack.c.b16 %v337, %v336
        %v351 = vpack.c.b16 %v339, %v338
        %v352 = vpack.c.b16 %v341, %v340
        %v353 = vpack.c.b16 %v343, %v342
        %v354 = vpack.c.b16 %v345, %v344
        %v355 = vpack.c.b16 %v347, %v346
        %v358 = vunpack.c.l.b16 %v307
        %v359 = vunpack.c.l.b16 %v308
        %v360 = vpack.c.b16 %v359, %v358
        %vm362 = vcmask 130048
        %v364 = vsel %vm362, %v348, 0
        %v367 = vsel %vm362, %v349, 0
        %v370 = vsel %vm362, %v350, 0
        %v373 = vsel %vm362, %v351, 0
        %v376 = vsel %vm362, %v352, 0
        %v379 = vsel %vm362, %v353, 0
        %v382 = vsel %vm362, %v354, 0
        %v385 = vsel %vm362, %v355, 0
        %387 = vmatprep.subr.bf16.mxu0 0
        %388 = vmatpush1.bf16.msra.mxu0 0
        %389 = vmatprep.subr.bf16.mxu0 0
        %390 = vmatpush1.bf16.msra.mxu0 0
        %391 = vmatprep.subr.bf16.mxu0 0
        %392 = vmatpush1.bf16.msra.mxu0 0
        %393 = vmatprep.subr.bf16.mxu0 0
        %394 = vmatpush1.bf16.msra.mxu0 0
        %395 = vmatprep.subr.bf16.mxu0 0
        %396 = vmatpush1.bf16.msra.mxu0 0
        %397 = vmatprep.subr.bf16.mxu0 0
        %398 = vmatpush1.bf16.msra.mxu0 0
        %399 = vmatprep.subr.bf16.mxu0 0
        %400 = vmatpush1.bf16.msra.mxu0 0
        %401 = vmatprep.subr.bf16.mxu0 0
        %402 = vmatpush1.bf16.msra.mxu0 %v360
        %403 = vmatprep.subr.bf16.mxu0 0
        %404 = vmatpush2.bf16.msra.mxu0 0
        %405 = vmatprep.subr.bf16.mxu0 0
        %406 = vmatpush2.bf16.msra.mxu0 0
        %407 = vmatprep.subr.bf16.mxu0 0
        %408 = vmatpush2.bf16.msra.mxu0 0
        %409 = vmatprep.subr.bf16.mxu0 0
        %410 = vmatpush2.bf16.msra.mxu0 0
        %411 = vmatprep.subr.bf16.mxu0 0
        %412 = vmatpush2.bf16.msra.mxu0 0
        %413 = vmatprep.subr.bf16.mxu0 0
        %414 = vmatpush2.bf16.msra.mxu0 0
        %415 = vmatprep.subr.bf16.mxu0 0
        %416 = vmatpush2.bf16.msra.mxu0 0
        %417 = vmatprep.subr.bf16.mxu0 0
        %418 = vmatpush2.bf16.msra.mxu0 0
        %419 = vmatprep.mubr.bf16.mxu0 0
        %420 = vmatmul.mubr.bf16.gmra.mxu0 %v364
        %v421 = vpop.f32.mrf.mxu0
        %v422 = vadd.f32 %v314, %v421
        %v423 = vpop.f32.mrf.mxu0
        %v424 = vpop.f32.mrf.mxu0
        %v425 = vadd.f32 %v314, %v424
        %v426 = vpop.f32.mrf.mxu0
        %427 = vmatprep.mubr.bf16.mxu0 0
        %428 = vmatmul.mubr.bf16.gmra.mxu0 %v367
        %v429 = vpop.f32.mrf.mxu0
        %v430 = vadd.f32 %v314, %v429
        %v431 = vpop.f32.mrf.mxu0
        %v432 = vpop.f32.mrf.mxu0
        %v433 = vadd.f32 %v314, %v432
        %v434 = vpop.f32.mrf.mxu0
        %435 = vmatprep.mubr.bf16.mxu0 0
        %436 = vmatmul.mubr.bf16.gmra.mxu0 %v370
        %v437 = vpop.f32.mrf.mxu0
        %v438 = vadd.f32 %v314, %v437
        %v439 = vpop.f32.mrf.mxu0
        %v440 = vpop.f32.mrf.mxu0
        %v441 = vadd.f32 %v314, %v440
        %v442 = vpop.f32.mrf.mxu0
        %443 = vmatprep.mubr.bf16.mxu0 0
        %444 = vmatmul.mubr.bf16.gmra.mxu0 %v373
        %v445 = vpop.f32.mrf.mxu0
        %v446 = vadd.f32 %v314, %v445
        %v447 = vpop.f32.mrf.mxu0
        %v448 = vpop.f32.mrf.mxu0
        %v449 = vadd.f32 %v314, %v448
        %v450 = vpop.f32.mrf.mxu0
        %451 = vmatprep.mubr.bf16.mxu0 0
        %452 = vmatmul.mubr.bf16.gmra.mxu0 %v376
        %v453 = vpop.f32.mrf.mxu0
        %v454 = vadd.f32 %v314, %v453
        %v455 = vpop.f32.mrf.mxu0
        %v456 = vpop.f32.mrf.mxu0
        %v457 = vadd.f32 %v314, %v456
        %v458 = vpop.f32.mrf.mxu0
        %459 = vmatprep.mubr.bf16.mxu0 0
        %460 = vmatmul.mubr.bf16.gmra.mxu0 %v379
        %v461 = vpop.f32.mrf.mxu0
        %v462 = vadd.f32 %v314, %v461
        %v463 = vpop.f32.mrf.mxu0
        %v464 = vpop.f32.mrf.mxu0
        %v465 = vadd.f32 %v314, %v464
        %v466 = vpop.f32.mrf.mxu0
        %467 = vmatprep.mubr.bf16.mxu0 0
        %468 = vmatmul.mubr.bf16.gmra.mxu0 %v382
        %v469 = vpop.f32.mrf.mxu0
        %v470 = vadd.f32 %v314, %v469
        %v471 = vpop.f32.mrf.mxu0
        %v472 = vpop.f32.mrf.mxu0
        %v473 = vadd.f32 %v314, %v472
        %v474 = vpop.f32.mrf.mxu0
        %475 = vmatprep.mubr.bf16.mxu0 0
        %476 = vmatmul.mubr.bf16.gmra.mxu0 %v385
        %v477 = vpop.f32.mrf.mxu0
        %v478 = vadd.f32 %v314, %v477
        %v479 = vpop.f32.mrf.mxu0
        %v480 = vpop.f32.mrf.mxu0
        %v481 = vadd.f32 %v314, %v480
        %v482 = vpop.f32.mrf.mxu0
        %483 = vdwg.mxu0
        %v484 = vld [vmem:[%s287] sm:$0xff]
        %v485 = vld [vmem:[%s287 + $0x8] sm:$0xff]
        %v486 = vld [vmem:[%s287 + $0x10] sm:$0xff]
        %v487 = vld [vmem:[%s287 + $0x18] sm:$0xff]
        %v488 = vld [vmem:[%s287 + $0x20] sm:$0xff]
        %v489 = vld [vmem:[%s287 + $0x28] sm:$0xff]
        %v490 = vld [vmem:[%s287 + $0x30] sm:$0xff]
        %v491 = vld [vmem:[%s287 + $0x38] sm:$0xff]
        %v492 = vld [vmem:[%s287 + $0x40] sm:$0xff]
        %v493 = vld [vmem:[%s287 + $0x48] sm:$0xff]
        %v494 = vld [vmem:[%s287 + $0x50] sm:$0xff]
        %v495 = vld [vmem:[%s287 + $0x58] sm:$0xff]
        %v496 = vld [vmem:[%s287 + $0x60] sm:$0xff]
        %v497 = vld [vmem:[%s287 + $0x68] sm:$0xff]
        %v498 = vld [vmem:[%s287 + $0x70] sm:$0xff]
        %v499 = vld [vmem:[%s287 + $0x78] sm:$0xff]
        %501 = vset.pattern.permute.xlu0 0
        %502 = vperm.xlu0 %501, %v484
        %v503 = vpop.permute.xlu0 %502
        %506 = vset.pattern.permute.xlu0 0
        %507 = vperm.xlu0 %506, %v485
        %v508 = vpop.permute.xlu0 %507
        %511 = vset.pattern.permute.xlu0 0
        %512 = vperm.xlu0 %511, %v486
        %v513 = vpop.permute.xlu0 %512
        %516 = vset.pattern.permute.xlu0 0
        %517 = vperm.xlu0 %516, %v487
        %v518 = vpop.permute.xlu0 %517
        %521 = vset.pattern.permute.xlu0 0
        %522 = vperm.xlu0 %521, %v488
        %v523 = vpop.permute.xlu0 %522
        %526 = vset.pattern.permute.xlu0 0
        %527 = vperm.xlu0 %526, %v489
        %v528 = vpop.permute.xlu0 %527
        %531 = vset.pattern.permute.xlu0 0
        %532 = vperm.xlu0 %531, %v490
        %v533 = vpop.permute.xlu0 %532
        %536 = vset.pattern.permute.xlu0 0
        %537 = vperm.xlu0 %536, %v491
        %v538 = vpop.permute.xlu0 %537
        %541 = vset.pattern.permute.xlu0 0
        %542 = vperm.xlu0 %541, %v492
        %v543 = vpop.permute.xlu0 %542
        %546 = vset.pattern.permute.xlu0 0
        %547 = vperm.xlu0 %546, %v493
        %v548 = vpop.permute.xlu0 %547
        %551 = vset.pattern.permute.xlu0 0
        %552 = vperm.xlu0 %551, %v494
        %v553 = vpop.permute.xlu0 %552
        %556 = vset.pattern.permute.xlu0 0
        %557 = vperm.xlu0 %556, %v495
        %v558 = vpop.permute.xlu0 %557
        %561 = vset.pattern.permute.xlu0 0
        %562 = vperm.xlu0 %561, %v496
        %v563 = vpop.permute.xlu0 %562
        %566 = vset.pattern.permute.xlu0 0
        %567 = vperm.xlu0 %566, %v497
        %v568 = vpop.permute.xlu0 %567
        %571 = vset.pattern.permute.xlu0 0
        %572 = vperm.xlu0 %571, %v498
        %v573 = vpop.permute.xlu0 %572
        %576 = vset.pattern.permute.xlu0 0
        %577 = vperm.xlu0 %576, %v499
        %v578 = vpop.permute.xlu0 %577
        %v580 = vmul.f32 %v422, %v503
        %v581 = vmul.f32 %v425, %v508
        %v582 = vmul.f32 %v430, %v513
        %v583 = vmul.f32 %v433, %v518
        %v584 = vmul.f32 %v438, %v523
        %v585 = vmul.f32 %v441, %v528
        %v586 = vmul.f32 %v446, %v533
        %v587 = vmul.f32 %v449, %v538
        %v588 = vmul.f32 %v454, %v543
        %v589 = vmul.f32 %v457, %v548
        %v590 = vmul.f32 %v462, %v553
        %v591 = vmul.f32 %v465, %v558
        %v592 = vmul.f32 %v470, %v563
        %v593 = vmul.f32 %v473, %v568
        %v594 = vmul.f32 %v478, %v573
        %v595 = vmul.f32 %v481, %v578
        %v596 = vld [vmem:[%s4] sm:$0x1]
        %v598 = vlaneseq
        %v599 = vshrl.u32 %v598, 7
        %v600 = vsub.s32 0, %v599
        %v601 = vrot.slane %v596, %v600
        %v603 = vadd.f32 %v580, %v601
        %v604 = vadd.f32 %v581, %v601
        %v605 = vadd.f32 %v582, %v601
        %v606 = vadd.f32 %v583, %v601
        %v607 = vadd.f32 %v584, %v601
        %v608 = vadd.f32 %v585, %v601
        %v609 = vadd.f32 %v586, %v601
        %v610 = vadd.f32 %v587, %v601
        %v611 = vadd.f32 %v588, %v601
        %v612 = vadd.f32 %v589, %v601
        %v613 = vadd.f32 %v590, %v601
        %v614 = vadd.f32 %v591, %v601
        %v615 = vadd.f32 %v592, %v601
        %v616 = vadd.f32 %v593, %v601
        %v617 = vadd.f32 %v594, %v601
        %v618 = vadd.f32 %v595, %v601
        %619 = vst.msk [vmem:[%s268] sm:$0xff] %vm362, %v603
        %620 = vst.msk [vmem:[%s268 + $0x8] sm:$0xff] %vm362, %v604
        %621 = vst.msk [vmem:[%s268 + $0x10] sm:$0xff] %vm362, %v605
        %622 = vst.msk [vmem:[%s268 + $0x18] sm:$0xff] %vm362, %v606
        %623 = vst.msk [vmem:[%s268 + $0x20] sm:$0xff] %vm362, %v607
        %624 = vst.msk [vmem:[%s268 + $0x28] sm:$0xff] %vm362, %v608
        %625 = vst.msk [vmem:[%s268 + $0x30] sm:$0xff] %vm362, %v609
        %626 = vst.msk [vmem:[%s268 + $0x38] sm:$0xff] %vm362, %v610
        %627 = vst.msk [vmem:[%s268 + $0x40] sm:$0xff] %vm362, %v611
        %628 = vst.msk [vmem:[%s268 + $0x48] sm:$0xff] %vm362, %v612
        %629 = vst.msk [vmem:[%s268 + $0x50] sm:$0xff] %vm362, %v613
        %630 = vst.msk [vmem:[%s268 + $0x58] sm:$0xff] %vm362, %v614
        %631 = vst.msk [vmem:[%s268 + $0x60] sm:$0xff] %vm362, %v615
        %632 = vst.msk [vmem:[%s268 + $0x68] sm:$0xff] %vm362, %v616
        %633 = vst.msk [vmem:[%s268 + $0x70] sm:$0xff] %vm362, %v617
        %634 = vst.msk [vmem:[%s268 + $0x78] sm:$0xff] %vm362, %v618
        %s635 = sand.u32 %s160, 1
        %s636 = scalar_lea.sflag [#allocation3], %s635
        %s637 = sand.u32 %s160, 1
        %s638 = smul.addr %s637, 128
        %s639 = scalar_lea.vmem [#allocation2], %s638
        // Predicated region
        $region41: #{learnable_edge_attention_forward.5} parent=39 // pred_check
          %p640 = pneg %p170
        $region42: #{learnable_edge_attention_forward.5} parent=39 // pred_check_branch
          %642 = sbr.rel (%p640) target = $region44
        $region43: #{learnable_edge_attention_forward.5} parent=39 // pred_region
          %s643 = smul.u32 16, %s24
          %s645 = ssub.s32 2048, 2048
          %646 = vsyncadd %s636, %s645
          %s647 = smul.addr %s23, 64
          %s648 = sadd.s32 %s643, %s647
          %s649 = smul.addr %s648, 128
          %s650 = scalar_lea.hbm %s5, %s649
          %s651 = sshll.u32 %s639, 4
          %s652 = int_to_ptr.vmem [resolvable:$true] %s651
          %657 = dma.vmem_to_hbm [thread:$0]  %s652, 2048, %s650, %s636, 128, 128, 8
        $region44: #{learnable_edge_attention_forward.5} parent=39 // pred_fallthru
          _
      $region40: #{learnable_edge_attention_forward.5} parent=5 // pred_fallthru
        _
      %p658 = scmp.le.s32.totalorder 2, %s14
      // Predicated region
      $region45: #{learnable_edge_attention_forward.5} parent=5 // pred_check
        %p659 = pneg %p658
      $region46: #{learnable_edge_attention_forward.5} parent=5 // pred_check_branch
        %661 = sbr.rel (%p659) target = $region48
      $region47: #{learnable_edge_attention_forward.5} parent=5 // pred_region
        %s662 = ssub.s32 %s14, 2
        // Predicated region
        $region49: #{learnable_edge_attention_forward.5} parent=47 // pred_check
          %p663 = pneg %p176
        $region50: #{learnable_edge_attention_forward.5} parent=47 // pred_check_branch
          %665 = sbr.rel (%p663) target = $region52
        $region51: #{learnable_edge_attention_forward.5} parent=47 // pred_region
          %s666 = sand.u32 %s161, 1
          %s667 = scalar_lea.sflag [#allocation3], %s666
          %s668 = sand.u32 %s161, 1
          %s669 = smul.addr %s668, 128
          %s670 = scalar_lea.vmem [#allocation2], %s669
          %671 = dma.done %s667, 2048
        $region52: #{learnable_edge_attention_forward.5} parent=47 // pred_fallthru
          _
      $region48: #{learnable_edge_attention_forward.5} parent=5 // pred_fallthru
        _
    $region6: #{learnable_edge_attention_forward.5} parent=1 // loop_footer
      %s18 = sadd.s32 1, %s14
    $region7: #{learnable_edge_attention_forward.5} parent=1 // loop_footer_branch
      %13 = sbr.rel target = $region3
    $region8: #{learnable_edge_attention_forward.5} parent=1 // loop_exit
      _
    %672 = vsyncpa [#allocation3], 1
    %s673 = scalar_lea.sflag [#allocation3], 1
    %674 = vsyncpa %s673, 1

</llo_original>
